<compile_context>
chip_gen: v6e
topology: v6e:2x2x1
jax: 0.10.0
libtpu: 0.0.40
codegen_flags: <defaults>
</compile_context>

<pallas_src>
import jax
import jax.numpy as jnp
from jax.experimental import pallas as pl
from jax.experimental.pallas import tpu as pltpu


def _edge_mlp_kernel(x_ref, w1_ref, b1_ref, w2_ref, b2_ref, o_ref):
    # First linear on the MXU, f32 accumulation.
    h = jnp.dot(x_ref[...], w1_ref[...], preferred_element_type=jnp.float32)
    # Bias + ReLU on the VPU.
    h = jnp.maximum(h + b1_ref[...], 0.0)
    # Second linear on the MXU.
    out = jnp.dot(h, w2_ref[...], preferred_element_type=jnp.float32)
    o_ref[...] = (out + b2_ref[...]).astype(o_ref.dtype)


def edge_mlp(edge_attr, w1, b1, w2, b2, *, block_rows=1024):
    """y = relu(edge_attr @ w1 + b1) @ w2 + b2, tiled over the edge dim."""
    E, input_dim = edge_attr.shape
    hidden_dim = w1.shape[1]
    out_dim = w2.shape[1]
    out_dtype = edge_attr.dtype

    # Clamp the tile for small E (avoid large padded tails), keep sublane rule.
    tm = min(block_rows, pl.cdiv(max(E, 8), 8) * 8)
    tm = max(8, (tm // 8) * 8)
    assert tm % 8 == 0, "edge tile must satisfy the (8,128) sublane rule"

    # Pad ragged tail so every tile is full (tail rows sliced off below).
    e_pad = pl.cdiv(E, tm) * tm
    x = edge_attr if e_pad == E else jnp.pad(edge_attr, ((0, e_pad - E), (0, 0)))

    w1_f = w1.astype(jnp.float32)
    w2_f = w2.astype(jnp.float32)
    b1_f = b1.astype(jnp.float32).reshape(1, hidden_dim)
    b2_f = b2.astype(jnp.float32).reshape(1, out_dim)

    cost = pl.CostEstimate(
        flops=2 * E * (input_dim * hidden_dim + hidden_dim * out_dim),
        transcendentals=0,
        bytes_accessed=(e_pad * input_dim * 4            # f32 edge stream in
                        + e_pad * out_dim * 4            # f32 output stream
                        + (input_dim * hidden_dim + hidden_dim * out_dim) * 4
                        + (hidden_dim + out_dim) * 4),   # resident weights/biases
    )

    out_padded = pl.pallas_call(
        _edge_mlp_kernel,
        out_shape=jax.ShapeDtypeStruct((e_pad, out_dim), out_dtype),
        grid=(e_pad // tm,),
        in_specs=[
            pl.BlockSpec((tm, input_dim), lambda i: (i, 0)),   # streamed edges
            pl.BlockSpec(w1_f.shape, lambda i: (0, 0)),        # resident weights
            pl.BlockSpec(b1_f.shape, lambda i: (0, 0)),
            pl.BlockSpec(w2_f.shape, lambda i: (0, 0)),
            pl.BlockSpec(b2_f.shape, lambda i: (0, 0)),
        ],
        out_specs=pl.BlockSpec((tm, out_dim), lambda i: (i, 0)),
        compiler_params=pltpu.CompilerParams(
            dimension_semantics=("parallel",),                 # megacore on v7x
        ),
        cost_estimate=cost,
    )(x.astype(jnp.float32), w1_f, b1_f, w2_f, b2_f)

    return out_padded[:E].astype(out_dtype)


def init_params(key, input_dim, hidden_dim, out_dim, dtype=jnp.float32):
    # PyTorch nn.Linear-style uniform(-1/sqrt(fan_in), 1/sqrt(fan_in)) init.
    # Weights stored as (in_features, out_features) so the kernel does x @ W + b.
    k1, k2, k3, k4 = jax.random.split(key, 4)
    lim1 = 1.0 / jnp.sqrt(jnp.array(input_dim, dtype))
    lim2 = 1.0 / jnp.sqrt(jnp.array(hidden_dim, dtype))
    w1 = jax.random.uniform(k1, (input_dim, hidden_dim), dtype, -lim1, lim1)
    b1 = jax.random.uniform(k2, (1, hidden_dim), dtype, -lim1, lim1)
    w2 = jax.random.uniform(k3, (hidden_dim, out_dim), dtype, -lim2, lim2)
    b2 = jax.random.uniform(k4, (1, out_dim), dtype, -lim2, lim2)
    return w1, b1, w2, b2


if __name__ == "__main__":
    input_dim, hidden_dim, out_dim = 16, 32, 8
    num_edges = 1000  # ragged vs the row tile -> exercises padding path

    key = jax.random.PRNGKey(0)
    k_x, k_p = jax.random.split(key)
    edge_attr = jax.random.normal(k_x, (num_edges, input_dim), jnp.float32)
    w1, b1, w2, b2 = init_params(k_p, input_dim, hidden_dim, out_dim)

    out = edge_mlp(edge_attr, w1, b1, w2, b2, block_rows=1024)
    out = jax.block_until_ready(out)
    assert out.shape == (num_edges, out_dim)

    # Pure-f32 reference (same math as the PyTorch module's forward).
    ref_f32 = jnp.maximum(edge_attr @ w1 + b1, 0.0) @ w2 + b2
    max_err = float(jnp.max(jnp.abs(out - ref_f32)))
    assert jnp.allclose(out, ref_f32, atol=2e-2, rtol=2e-2), max_err

    # Also exercise a multi-tile grid to make sure tiling/padding is correct.
    out_small_tile = edge_mlp(edge_attr, w1, b1, w2, b2, block_rows=256)
    out_small_tile = jax.block_until_ready(out_small_tile)
    assert jnp.allclose(out_small_tile, ref_f32, atol=2e-2, rtol=2e-2)

    print("KERNEL_OK")
</pallas_src>

<mosaic_0001>
module attributes {stable_mosaic.version = 11 : i64} {
  func.func @_edge_mlp_kernel(%arg0: i32, %arg1: memref<1000x16xf32, #tpu.memory_space<vmem>>, %arg2: memref<16x32xf32, #tpu.memory_space<vmem>>, %arg3: memref<1x32xf32, #tpu.memory_space<vmem>>, %arg4: memref<32x8xf32, #tpu.memory_space<vmem>>, %arg5: memref<1x8xf32, #tpu.memory_space<vmem>>, %arg6: memref<1000x8xf32, #tpu.memory_space<vmem>>) attributes {dimension_semantics = [#tpu.dimension_semantics<parallel>], iteration_bounds = array<i64: 1>, scalar_prefetch = 0 : i64, scratch_operands = 0 : i64, tpu.core_type = #tpu.core_type<tc>, window_params = [{transform_indices = @transform_0, window_bounds = array<i64: 1000, 16>}, {pipeline_mode = #tpu.pipeline_mode<synchronous>, transform_indices = @transform_1, window_bounds = array<i64: 16, 32>}, {pipeline_mode = #tpu.pipeline_mode<synchronous>, transform_indices = @transform_2, window_bounds = array<i64: 1, 32>}, {pipeline_mode = #tpu.pipeline_mode<synchronous>, transform_indices = @transform_3, window_bounds = array<i64: 32, 8>}, {pipeline_mode = #tpu.pipeline_mode<synchronous>, transform_indices = @transform_4, window_bounds = array<i64: 1, 8>}, {transform_indices = @transform_5, window_bounds = array<i64: 1000, 8>}]} {
    %c0 = arith.constant 0 : index
    %c0_0 = arith.constant 0 : index
    %0 = vector.load %arg1[%c0, %c0_0] : memref<1000x16xf32, #tpu.memory_space<vmem>>, vector<1000x16xf32>
    %c0_1 = arith.constant 0 : index
    %c0_2 = arith.constant 0 : index
    %1 = vector.load %arg2[%c0_1, %c0_2] : memref<16x32xf32, #tpu.memory_space<vmem>>, vector<16x32xf32>
    %cst = arith.constant dense<0.000000e+00> : vector<1000x32xf32>
    %2 = tpu.matmul %0, %1, %cst {dimension_numbers = #tpu.dot_dimension_numbers<[1], [0], [0], [1], [0, 0, 1, 1], [], []>} : vector<1000x16xf32>, vector<16x32xf32>, vector<1000x32xf32> -> vector<1000x32xf32>
    %c0_3 = arith.constant 0 : index
    %c0_4 = arith.constant 0 : index
    %3 = vector.load %arg3[%c0_3, %c0_4] : memref<1x32xf32, #tpu.memory_space<vmem>>, vector<1x32xf32>
    %4 = vector.broadcast %3 : vector<1x32xf32> to vector<1000x32xf32>
    %5 = arith.addf %2, %4 : vector<1000x32xf32>
    %cst_5 = arith.constant 0.000000e+00 : f32
    %6 = vector.broadcast %cst_5 : f32 to vector<1000x32xf32>
    %7 = arith.maximumf %5, %6 : vector<1000x32xf32>
    %c0_6 = arith.constant 0 : index
    %c0_7 = arith.constant 0 : index
    %8 = vector.load %arg4[%c0_6, %c0_7] : memref<32x8xf32, #tpu.memory_space<vmem>>, vector<32x8xf32>
    %cst_8 = arith.constant dense<0.000000e+00> : vector<1000x8xf32>
    %9 = tpu.matmul %7, %8, %cst_8 {dimension_numbers = #tpu.dot_dimension_numbers<[1], [0], [0], [1], [0, 0, 1, 1], [], []>} : vector<1000x32xf32>, vector<32x8xf32>, vector<1000x8xf32> -> vector<1000x8xf32>
    %c0_9 = arith.constant 0 : index
    %c0_10 = arith.constant 0 : index
    %10 = vector.load %arg5[%c0_9, %c0_10] : memref<1x8xf32, #tpu.memory_space<vmem>>, vector<1x8xf32>
    %11 = vector.broadcast %10 : vector<1x8xf32> to vector<1000x8xf32>
    %12 = arith.addf %9, %11 : vector<1000x8xf32>
    %c0_11 = arith.constant 0 : index
    %c0_12 = arith.constant 0 : index
    %13 = vector.load %arg6[%c0_11, %c0_12] : memref<1000x8xf32, #tpu.memory_space<vmem>>, vector<1000x8xf32>
    tpu.vector_store %arg6[%c0_11, %c0_12], %12 {strides = array<i32>} : memref<1000x8xf32, #tpu.memory_space<vmem>>, vector<1000x8xf32>,
    return
  }
  func.func @transform_0(%arg0: i32) -> (i32, i32) {
    %c0_i32 = arith.constant 0 : i32
    %c0_i32_0 = arith.constant 0 : i32
    return %arg0, %c0_i32 : i32, i32
  }
  func.func @transform_1(%arg0: i32) -> (i32, i32) {
    %c0_i32 = arith.constant 0 : i32
    %c0_i32_0 = arith.constant 0 : i32
    %c0_i32_1 = arith.constant 0 : i32
    return %c0_i32, %c0_i32_0 : i32, i32
  }
  func.func @transform_2(%arg0: i32) -> (i32, i32) {
    %c0_i32 = arith.constant 0 : i32
    %c0_i32_0 = arith.constant 0 : i32
    %c0_i32_1 = arith.constant 0 : i32
    return %c0_i32, %c0_i32_0 : i32, i32
  }
  func.func @transform_3(%arg0: i32) -> (i32, i32) {
    %c0_i32 = arith.constant 0 : i32
    %c0_i32_0 = arith.constant 0 : i32
    %c0_i32_1 = arith.constant 0 : i32
    return %c0_i32, %c0_i32_0 : i32, i32
  }
  func.func @transform_4(%arg0: i32) -> (i32, i32) {
    %c0_i32 = arith.constant 0 : i32
    %c0_i32_0 = arith.constant 0 : i32
    %c0_i32_1 = arith.constant 0 : i32
    return %c0_i32, %c0_i32_0 : i32, i32
  }
  func.func @transform_5(%arg0: i32) -> (i32, i32) {
    %c0_i32 = arith.constant 0 : i32
    %c0_i32_0 = arith.constant 0 : i32
    return %arg0, %c0_i32 : i32, i32
  }
}

</mosaic_0001>

<llo_original>
// kernel: tpu_custom_call.1
$region0: #{tpu_custom_call.1}
  #allocation0 [shape = 'u32[]', space=smem, size = 0x4, offset = 0x4, fixed_abs, tag = 'smem constant byte address 0x4 - core index']
  #allocation1 [shape = 'u32[144,128]{1,0:T(1,128)}', space=vmem, size = 0x12000, scoped, tag = 'internal scratch']
  %s0 = inlined_call_operand.vmem [shape: f32[1000,16], index: 0, kind: input, shape index: {}]
  %s1 = inlined_call_operand.vmem [shape: f32[16,32], index: 1, kind: input, shape index: {}]
  %s2 = inlined_call_operand.vmem [shape: f32[1,32], index: 2, kind: input, shape index: {}]
  %s3 = inlined_call_operand.vmem [shape: f32[32,8], index: 3, kind: input, shape index: {}]
  %s4 = inlined_call_operand.vmem [shape: f32[1,8], index: 4, kind: input, shape index: {}]
  %s5 = inlined_call_operand.vmem [shape: f32[1000,8], index: 5, kind: output, shape index: {}]
  %s6 = sld [smem:[#allocation0]]
  $region30: #{tpu_custom_call.1} parent=0
    _
  %s8 = ssub.s32 1, %s6
  %s9 = scalar_select 0, %s8, %s6
  // Predicated region
  $region2: #{tpu_custom_call.1} parent=0 // pred_check
    _
  $region3: #{tpu_custom_call.1} parent=0 // pred_check_branch
    %11 = sbr.rel (0) target = $region5
  $region4: #{tpu_custom_call.1} parent=0 // pred_region
    _
  $region5: #{tpu_custom_call.1} parent=0 // pred_fallthru
    _
  // Predicated region
  $region6: #{tpu_custom_call.1} parent=0 // pred_check
    _
  $region7: #{tpu_custom_call.1} parent=0 // pred_check_branch
    %13 = sbr.rel (0) target = $region9
  $region8: #{tpu_custom_call.1} parent=0 // pred_region
    _
  $region9: #{tpu_custom_call.1} parent=0 // pred_fallthru
    _
  // Predicated region
  $region10: #{tpu_custom_call.1} parent=0 // pred_check
    _
  $region11: #{tpu_custom_call.1} parent=0 // pred_check_branch
    %15 = sbr.rel (0) target = $region13
  $region12: #{tpu_custom_call.1} parent=0 // pred_region
    _
  $region13: #{tpu_custom_call.1} parent=0 // pred_fallthru
    _
  // Predicated region
  $region14: #{tpu_custom_call.1} parent=0 // pred_check
    _
  $region15: #{tpu_custom_call.1} parent=0 // pred_check_branch
    %17 = sbr.rel (0) target = $region17
  $region16: #{tpu_custom_call.1} parent=0 // pred_region
    _
  $region17: #{tpu_custom_call.1} parent=0 // pred_fallthru
    _
  // Predicated region
  $region18: #{tpu_custom_call.1} parent=0 // pred_check
    _
  $region19: #{tpu_custom_call.1} parent=0 // pred_check_branch
    %19 = sbr.rel (0) target = $region21
  $region20: #{tpu_custom_call.1} parent=0 // pred_region
    _
  $region21: #{tpu_custom_call.1} parent=0 // pred_fallthru
    _
  %v20 = vld [vmem:[%s0] sm:$0xff]
  %v21 = vld [vmem:[%s0 + $0x8] sm:$0xff]
  %v22 = vld [vmem:[%s0 + $0x10] sm:$0xff]
  %v23 = vld [vmem:[%s0 + $0x18] sm:$0xff]
  %v24 = vld [vmem:[%s0 + $0x20] sm:$0xff]
  %v25 = vld [vmem:[%s0 + $0x28] sm:$0xff]
  %v26 = vld [vmem:[%s0 + $0x30] sm:$0xff]
  %v27 = vld [vmem:[%s0 + $0x38] sm:$0xff]
  %v28 = vld [vmem:[%s0 + $0x40] sm:$0xff]
  %v29 = vld [vmem:[%s0 + $0x48] sm:$0xff]
  %v30 = vld [vmem:[%s0 + $0x50] sm:$0xff]
  %v31 = vld [vmem:[%s0 + $0x58] sm:$0xff]
  %v32 = vld [vmem:[%s0 + $0x60] sm:$0xff]
  %v33 = vld [vmem:[%s0 + $0x68] sm:$0xff]
  %v34 = vld [vmem:[%s0 + $0x70] sm:$0xff]
  %v35 = vld [vmem:[%s0 + $0x78] sm:$0xff]
  %v36 = vld [vmem:[%s0 + $0x80] sm:$0xff]
  %v37 = vld [vmem:[%s0 + $0x88] sm:$0xff]
  %v38 = vld [vmem:[%s0 + $0x90] sm:$0xff]
  %v39 = vld [vmem:[%s0 + $0x98] sm:$0xff]
  %v40 = vld [vmem:[%s0 + $0xa0] sm:$0xff]
  %v41 = vld [vmem:[%s0 + $0xa8] sm:$0xff]
  %v42 = vld [vmem:[%s0 + $0xb0] sm:$0xff]
  %v43 = vld [vmem:[%s0 + $0xb8] sm:$0xff]
  %v44 = vld [vmem:[%s0 + $0xc0] sm:$0xff]
  %v45 = vld [vmem:[%s0 + $0xc8] sm:$0xff]
  %v46 = vld [vmem:[%s0 + $0xd0] sm:$0xff]
  %v47 = vld [vmem:[%s0 + $0xd8] sm:$0xff]
  %v48 = vld [vmem:[%s0 + $0xe0] sm:$0xff]
  %v49 = vld [vmem:[%s0 + $0xe8] sm:$0xff]
  %v50 = vld [vmem:[%s0 + $0xf0] sm:$0xff]
  %v51 = vld [vmem:[%s0 + $0xf8] sm:$0xff]
  %v52 = vld [vmem:[%s0 + $0x100] sm:$0xff]
  %v53 = vld [vmem:[%s0 + $0x108] sm:$0xff]
  %v54 = vld [vmem:[%s0 + $0x110] sm:$0xff]
  %v55 = vld [vmem:[%s0 + $0x118] sm:$0xff]
  %v56 = vld [vmem:[%s0 + $0x120] sm:$0xff]
  %v57 = vld [vmem:[%s0 + $0x128] sm:$0xff]
  %v58 = vld [vmem:[%s0 + $0x130] sm:$0xff]
  %v59 = vld [vmem:[%s0 + $0x138] sm:$0xff]
  %v60 = vld [vmem:[%s0 + $0x140] sm:$0xff]
  %v61 = vld [vmem:[%s0 + $0x148] sm:$0xff]
  %v62 = vld [vmem:[%s0 + $0x150] sm:$0xff]
  %v63 = vld [vmem:[%s0 + $0x158] sm:$0xff]
  %v64 = vld [vmem:[%s0 + $0x160] sm:$0xff]
  %v65 = vld [vmem:[%s0 + $0x168] sm:$0xff]
  %v66 = vld [vmem:[%s0 + $0x170] sm:$0xff]
  %v67 = vld [vmem:[%s0 + $0x178] sm:$0xff]
  %v68 = vld [vmem:[%s0 + $0x180] sm:$0xff]
  %v69 = vld [vmem:[%s0 + $0x188] sm:$0xff]
  %v70 = vld [vmem:[%s0 + $0x190] sm:$0xff]
  %v71 = vld [vmem:[%s0 + $0x198] sm:$0xff]
  %v72 = vld [vmem:[%s0 + $0x1a0] sm:$0xff]
  %v73 = vld [vmem:[%s0 + $0x1a8] sm:$0xff]
  %v74 = vld [vmem:[%s0 + $0x1b0] sm:$0xff]
  %v75 = vld [vmem:[%s0 + $0x1b8] sm:$0xff]
  %v76 = vld [vmem:[%s0 + $0x1c0] sm:$0xff]
  %v77 = vld [vmem:[%s0 + $0x1c8] sm:$0xff]
  %v78 = vld [vmem:[%s0 + $0x1d0] sm:$0xff]
  %v79 = vld [vmem:[%s0 + $0x1d8] sm:$0xff]
  %v80 = vld [vmem:[%s0 + $0x1e0] sm:$0xff]
  %v81 = vld [vmem:[%s0 + $0x1e8] sm:$0xff]
  %v82 = vld [vmem:[%s0 + $0x1f0] sm:$0xff]
  %v83 = vld [vmem:[%s0 + $0x1f8] sm:$0xff]
  %v84 = vld [vmem:[%s0 + $0x200] sm:$0xff]
  %v85 = vld [vmem:[%s0 + $0x208] sm:$0xff]
  %v86 = vld [vmem:[%s0 + $0x210] sm:$0xff]
  %v87 = vld [vmem:[%s0 + $0x218] sm:$0xff]
  %v88 = vld [vmem:[%s0 + $0x220] sm:$0xff]
  %v89 = vld [vmem:[%s0 + $0x228] sm:$0xff]
  %v90 = vld [vmem:[%s0 + $0x230] sm:$0xff]
  %v91 = vld [vmem:[%s0 + $0x238] sm:$0xff]
  %v92 = vld [vmem:[%s0 + $0x240] sm:$0xff]
  %v93 = vld [vmem:[%s0 + $0x248] sm:$0xff]
  %v94 = vld [vmem:[%s0 + $0x250] sm:$0xff]
  %v95 = vld [vmem:[%s0 + $0x258] sm:$0xff]
  %v96 = vld [vmem:[%s0 + $0x260] sm:$0xff]
  %v97 = vld [vmem:[%s0 + $0x268] sm:$0xff]
  %v98 = vld [vmem:[%s0 + $0x270] sm:$0xff]
  %v99 = vld [vmem:[%s0 + $0x278] sm:$0xff]
  %v100 = vld [vmem:[%s0 + $0x280] sm:$0xff]
  %v101 = vld [vmem:[%s0 + $0x288] sm:$0xff]
  %v102 = vld [vmem:[%s0 + $0x290] sm:$0xff]
  %v103 = vld [vmem:[%s0 + $0x298] sm:$0xff]
  %v104 = vld [vmem:[%s0 + $0x2a0] sm:$0xff]
  %v105 = vld [vmem:[%s0 + $0x2a8] sm:$0xff]
  %v106 = vld [vmem:[%s0 + $0x2b0] sm:$0xff]
  %v107 = vld [vmem:[%s0 + $0x2b8] sm:$0xff]
  %v108 = vld [vmem:[%s0 + $0x2c0] sm:$0xff]
  %v109 = vld [vmem:[%s0 + $0x2c8] sm:$0xff]
  %v110 = vld [vmem:[%s0 + $0x2d0] sm:$0xff]
  %v111 = vld [vmem:[%s0 + $0x2d8] sm:$0xff]
  %v112 = vld [vmem:[%s0 + $0x2e0] sm:$0xff]
  %v113 = vld [vmem:[%s0 + $0x2e8] sm:$0xff]
  %v114 = vld [vmem:[%s0 + $0x2f0] sm:$0xff]
  %v115 = vld [vmem:[%s0 + $0x2f8] sm:$0xff]
  %v116 = vld [vmem:[%s0 + $0x300] sm:$0xff]
  %v117 = vld [vmem:[%s0 + $0x308] sm:$0xff]
  %v118 = vld [vmem:[%s0 + $0x310] sm:$0xff]
  %v119 = vld [vmem:[%s0 + $0x318] sm:$0xff]
  %v120 = vld [vmem:[%s0 + $0x320] sm:$0xff]
  %v121 = vld [vmem:[%s0 + $0x328] sm:$0xff]
  %v122 = vld [vmem:[%s0 + $0x330] sm:$0xff]
  %v123 = vld [vmem:[%s0 + $0x338] sm:$0xff]
  %v124 = vld [vmem:[%s0 + $0x340] sm:$0xff]
  %v125 = vld [vmem:[%s0 + $0x348] sm:$0xff]
  %v126 = vld [vmem:[%s0 + $0x350] sm:$0xff]
  %v127 = vld [vmem:[%s0 + $0x358] sm:$0xff]
  %v128 = vld [vmem:[%s0 + $0x360] sm:$0xff]
  %v129 = vld [vmem:[%s0 + $0x368] sm:$0xff]
  %v130 = vld [vmem:[%s0 + $0x370] sm:$0xff]
  %v131 = vld [vmem:[%s0 + $0x378] sm:$0xff]
  %v132 = vld [vmem:[%s0 + $0x380] sm:$0xff]
  %v133 = vld [vmem:[%s0 + $0x388] sm:$0xff]
  %v134 = vld [vmem:[%s0 + $0x390] sm:$0xff]
  %v135 = vld [vmem:[%s0 + $0x398] sm:$0xff]
  %v136 = vld [vmem:[%s0 + $0x3a0] sm:$0xff]
  %v137 = vld [vmem:[%s0 + $0x3a8] sm:$0xff]
  %v138 = vld [vmem:[%s0 + $0x3b0] sm:$0xff]
  %v139 = vld [vmem:[%s0 + $0x3b8] sm:$0xff]
  %v140 = vld [vmem:[%s0 + $0x3c0] sm:$0xff]
  %v141 = vld [vmem:[%s0 + $0x3c8] sm:$0xff]
  %v142 = vld [vmem:[%s0 + $0x3d0] sm:$0xff]
  %v143 = vld [vmem:[%s0 + $0x3d8] sm:$0xff]
  %v144 = vld [vmem:[%s0 + $0x3e0] sm:$0xff]
  %v145 = vld [vmem:[%s1] sm:$0xff]
  %v146 = vld [vmem:[%s1 + $0x8] sm:$0xff]
  %v147 = vld [vmem:[%s2] sm:$0x1]
  %v149 = vlaneseq
  %v150 = vshrl.u32 %v149, 7
  %v151 = vsub.s32 0, %v150
  %v152 = vrot.slane %v147, %v151
  %vm154 = vcmask 130048
  %v156 = vsel %vm154, %v20, 0
  %v159 = vsel %vm154, %v21, 0
  %v162 = vsel %vm154, %v22, 0
  %v165 = vsel %vm154, %v23, 0
  %v168 = vsel %vm154, %v24, 0
  %v171 = vsel %vm154, %v25, 0
  %v174 = vsel %vm154, %v26, 0
  %v177 = vsel %vm154, %v27, 0
  %v180 = vsel %vm154, %v28, 0
  %v183 = vsel %vm154, %v29, 0
  %v186 = vsel %vm154, %v30, 0
  %v189 = vsel %vm154, %v31, 0
  %v192 = vsel %vm154, %v32, 0
  %v195 = vsel %vm154, %v33, 0
  %v198 = vsel %vm154, %v34, 0
  %v201 = vsel %vm154, %v35, 0
  %v204 = vsel %vm154, %v36, 0
  %v207 = vsel %vm154, %v37, 0
  %v210 = vsel %vm154, %v38, 0
  %v213 = vsel %vm154, %v39, 0
  %v216 = vsel %vm154, %v40, 0
  %v219 = vsel %vm154, %v41, 0
  %v222 = vsel %vm154, %v42, 0
  %v225 = vsel %vm154, %v43, 0
  %v228 = vsel %vm154, %v44, 0
  %v231 = vsel %vm154, %v45, 0
  %v234 = vsel %vm154, %v46, 0
  %v237 = vsel %vm154, %v47, 0
  %v240 = vsel %vm154, %v48, 0
  %v243 = vsel %vm154, %v49, 0
  %v246 = vsel %vm154, %v50, 0
  %v249 = vsel %vm154, %v51, 0
  %v252 = vsel %vm154, %v52, 0
  %v255 = vsel %vm154, %v53, 0
  %v258 = vsel %vm154, %v54, 0
  %v261 = vsel %vm154, %v55, 0
  %v264 = vsel %vm154, %v56, 0
  %v267 = vsel %vm154, %v57, 0
  %v270 = vsel %vm154, %v58, 0
  %v273 = vsel %vm154, %v59, 0
  %v276 = vsel %vm154, %v60, 0
  %v279 = vsel %vm154, %v61, 0
  %v282 = vsel %vm154, %v62, 0
  %v285 = vsel %vm154, %v63, 0
  %v288 = vsel %vm154, %v64, 0
  %v291 = vsel %vm154, %v65, 0
  %v294 = vsel %vm154, %v66, 0
  %v297 = vsel %vm154, %v67, 0
  %v300 = vsel %vm154, %v68, 0
  %v303 = vsel %vm154, %v69, 0
  %v306 = vsel %vm154, %v70, 0
  %v309 = vsel %vm154, %v71, 0
  %v312 = vsel %vm154, %v72, 0
  %v315 = vsel %vm154, %v73, 0
  %v318 = vsel %vm154, %v74, 0
  %v321 = vsel %vm154, %v75, 0
  %v324 = vsel %vm154, %v76, 0
  %v327 = vsel %vm154, %v77, 0
  %v330 = vsel %vm154, %v78, 0
  %v333 = vsel %vm154, %v79, 0
  %v336 = vsel %vm154, %v80, 0
  %v339 = vsel %vm154, %v81, 0
  %v342 = vsel %vm154, %v82, 0
  %v345 = vsel %vm154, %v83, 0
  %v348 = vsel %vm154, %v84, 0
  %v351 = vsel %vm154, %v85, 0
  %v354 = vsel %vm154, %v86, 0
  %v357 = vsel %vm154, %v87, 0
  %v360 = vsel %vm154, %v88, 0
  %v363 = vsel %vm154, %v89, 0
  %v366 = vsel %vm154, %v90, 0
  %v369 = vsel %vm154, %v91, 0
  %v372 = vsel %vm154, %v92, 0
  %v375 = vsel %vm154, %v93, 0
  %v378 = vsel %vm154, %v94, 0
  %v381 = vsel %vm154, %v95, 0
  %v384 = vsel %vm154, %v96, 0
  %v387 = vsel %vm154, %v97, 0
  %v390 = vsel %vm154, %v98, 0
  %v393 = vsel %vm154, %v99, 0
  %v396 = vsel %vm154, %v100, 0
  %v399 = vsel %vm154, %v101, 0
  %v402 = vsel %vm154, %v102, 0
  %v405 = vsel %vm154, %v103, 0
  %v408 = vsel %vm154, %v104, 0
  %v411 = vsel %vm154, %v105, 0
  %v414 = vsel %vm154, %v106, 0
  %v417 = vsel %vm154, %v107, 0
  %v420 = vsel %vm154, %v108, 0
  %v423 = vsel %vm154, %v109, 0
  %v426 = vsel %vm154, %v110, 0
  %v429 = vsel %vm154, %v111, 0
  %v432 = vsel %vm154, %v112, 0
  %v435 = vsel %vm154, %v113, 0
  %v438 = vsel %vm154, %v114, 0
  %v441 = vsel %vm154, %v115, 0
  %v444 = vsel %vm154, %v116, 0
  %v447 = vsel %vm154, %v117, 0
  %v450 = vsel %vm154, %v118, 0
  %v453 = vsel %vm154, %v119, 0
  %v456 = vsel %vm154, %v120, 0
  %v459 = vsel %vm154, %v121, 0
  %v462 = vsel %vm154, %v122, 0
  %v465 = vsel %vm154, %v123, 0
  %v468 = vsel %vm154, %v124, 0
  %v471 = vsel %vm154, %v125, 0
  %v474 = vsel %vm154, %v126, 0
  %v477 = vsel %vm154, %v127, 0
  %v480 = vsel %vm154, %v128, 0
  %v483 = vsel %vm154, %v129, 0
  %v486 = vsel %vm154, %v130, 0
  %v489 = vsel %vm154, %v131, 0
  %v492 = vsel %vm154, %v132, 0
  %v495 = vsel %vm154, %v133, 0
  %v498 = vsel %vm154, %v134, 0
  %v501 = vsel %vm154, %v135, 0
  %v504 = vsel %vm154, %v136, 0
  %v507 = vsel %vm154, %v137, 0
  %v510 = vsel %vm154, %v138, 0
  %v513 = vsel %vm154, %v139, 0
  %v516 = vsel %vm154, %v140, 0
  %v519 = vsel %vm154, %v141, 0
  %v522 = vsel %vm154, %v142, 0
  %v525 = vsel %vm154, %v143, 0
  %v528 = vsel %vm154, %v144, 0
  %530 = vmatprep.subr.mxu0 0.0
  %531 = vmatpush1.msra.mxu0 0.0
  %532 = vmatprep.subr.mxu0 0.0
  %533 = vmatpush1.msra.mxu0 0.0
  %534 = vmatprep.subr.mxu0 0.0
  %535 = vmatpush1.msra.mxu0 0.0
  %536 = vmatprep.subr.mxu0 0.0
  %537 = vmatpush1.msra.mxu0 0.0
  %538 = vmatprep.subr.mxu0 0.0
  %539 = vmatpush1.msra.mxu0 0.0
  %540 = vmatprep.subr.mxu0 0.0
  %541 = vmatpush1.msra.mxu0 0.0
  %542 = vmatprep.subr.mxu0 0.0
  %543 = vmatpush1.msra.mxu0 0.0
  %544 = vmatprep.subr.mxu0 0.0
  %545 = vmatpush1.msra.mxu0 0.0
  %546 = vmatprep.subr.mxu0 0.0
  %547 = vmatpush1.msra.mxu0 0.0
  %548 = vmatprep.subr.mxu0 0.0
  %549 = vmatpush1.msra.mxu0 0.0
  %550 = vmatprep.subr.mxu0 0.0
  %551 = vmatpush1.msra.mxu0 0.0
  %552 = vmatprep.subr.mxu0 0.0
  %553 = vmatpush1.msra.mxu0 0.0
  %554 = vmatprep.subr.mxu0 0.0
  %555 = vmatpush1.msra.mxu0 0.0
  %556 = vmatprep.subr.mxu0 0.0
  %557 = vmatpush1.msra.mxu0 0.0
  %558 = vmatprep.subr.mxu0 0.0
  %559 = vmatpush1.msra.mxu0 %v146
  %560 = vmatprep.subr.mxu0 0.0
  %561 = vmatpush1.msra.mxu0 %v145
  %562 = vmatprep.subr.mxu0 0.0
  %563 = vmatpush2.msra.mxu0 0.0
  %564 = vmatprep.subr.mxu0 0.0
  %565 = vmatpush2.msra.mxu0 0.0
  %566 = vmatprep.subr.mxu0 0.0
  %567 = vmatpush2.msra.mxu0 0.0
  %568 = vmatprep.subr.mxu0 0.0
  %569 = vmatpush2.msra.mxu0 0.0
  %570 = vmatprep.subr.mxu0 0.0
  %571 = vmatpush2.msra.mxu0 0.0
  %572 = vmatprep.subr.mxu0 0.0
  %573 = vmatpush2.msra.mxu0 0.0
  %574 = vmatprep.subr.mxu0 0.0
  %575 = vmatpush2.msra.mxu0 0.0
  %576 = vmatprep.subr.mxu0 0.0
  %577 = vmatpush2.msra.mxu0 0.0
  %578 = vmatprep.subr.mxu0 0.0
  %579 = vmatpush2.msra.mxu0 0.0
  %580 = vmatprep.subr.mxu0 0.0
  %581 = vmatpush2.msra.mxu0 0.0
  %582 = vmatprep.subr.mxu0 0.0
  %583 = vmatpush2.msra.mxu0 0.0
  %584 = vmatprep.subr.mxu0 0.0
  %585 = vmatpush2.msra.mxu0 0.0
  %586 = vmatprep.subr.mxu0 0.0
  %587 = vmatpush2.msra.mxu0 0.0
  %588 = vmatprep.subr.mxu0 0.0
  %589 = vmatpush2.msra.mxu0 0.0
  %590 = vmatprep.subr.mxu0 0.0
  %591 = vmatpush2.msra.mxu0 0.0
  %592 = vmatprep.subr.mxu0 0.0
  %593 = vmatpush2.msra.mxu0 0.0
  %594 = vmatprep.mubr.f32.mxu0 0.0
  %595 = vmatmul.mubr.f32.gmra.mxu0 %v156
  %v596 = vpop.f32.mrf.mxu0
  %v597 = vadd.f32 %v152, %v596
  %v598 = vpop.f32.mrf.mxu0
  %599 = vmatprep.mubr.f32.mxu0 0.0
  %600 = vmatmul.mubr.f32.gmra.mxu0 %v159
  %v601 = vpop.f32.mrf.mxu0
  %v602 = vadd.f32 %v152, %v601
  %v603 = vpop.f32.mrf.mxu0
  %604 = vmatprep.mubr.f32.mxu0 0.0
  %605 = vmatmul.mubr.f32.gmra.mxu0 %v162
  %v606 = vpop.f32.mrf.mxu0
  %v607 = vadd.f32 %v152, %v606
  %v608 = vpop.f32.mrf.mxu0
  %609 = vmatprep.mubr.f32.mxu0 0.0
  %610 = vmatmul.mubr.f32.gmra.mxu0 %v165
  %v611 = vpop.f32.mrf.mxu0
  %v612 = vadd.f32 %v152, %v611
  %v613 = vpop.f32.mrf.mxu0
  %614 = vmatprep.mubr.f32.mxu0 0.0
  %615 = vmatmul.mubr.f32.gmra.mxu0 %v168
  %v616 = vpop.f32.mrf.mxu0
  %v617 = vadd.f32 %v152, %v616
  %v618 = vpop.f32.mrf.mxu0
  %619 = vmatprep.mubr.f32.mxu0 0.0
  %620 = vmatmul.mubr.f32.gmra.mxu0 %v171
  %v621 = vpop.f32.mrf.mxu0
  %v622 = vadd.f32 %v152, %v621
  %v623 = vpop.f32.mrf.mxu0
  %624 = vmatprep.mubr.f32.mxu0 0.0
  %625 = vmatmul.mubr.f32.gmra.mxu0 %v174
  %v626 = vpop.f32.mrf.mxu0
  %v627 = vadd.f32 %v152, %v626
  %v628 = vpop.f32.mrf.mxu0
  %629 = vmatprep.mubr.f32.mxu0 0.0
  %630 = vmatmul.mubr.f32.gmra.mxu0 %v177
  %v631 = vpop.f32.mrf.mxu0
  %v632 = vadd.f32 %v152, %v631
  %v633 = vpop.f32.mrf.mxu0
  %634 = vmatprep.mubr.f32.mxu0 0.0
  %635 = vmatmul.mubr.f32.gmra.mxu0 %v180
  %v636 = vpop.f32.mrf.mxu0
  %v637 = vadd.f32 %v152, %v636
  %v638 = vpop.f32.mrf.mxu0
  %639 = vmatprep.mubr.f32.mxu0 0.0
  %640 = vmatmul.mubr.f32.gmra.mxu0 %v183
  %v641 = vpop.f32.mrf.mxu0
  %v642 = vadd.f32 %v152, %v641
  %v643 = vpop.f32.mrf.mxu0
  %644 = vmatprep.mubr.f32.mxu0 0.0
  %645 = vmatmul.mubr.f32.gmra.mxu0 %v186
  %v646 = vpop.f32.mrf.mxu0
  %v647 = vadd.f32 %v152, %v646
  %v648 = vpop.f32.mrf.mxu0
  %649 = vmatprep.mubr.f32.mxu0 0.0
  %650 = vmatmul.mubr.f32.gmra.mxu0 %v189
  %v651 = vpop.f32.mrf.mxu0
  %v652 = vadd.f32 %v152, %v651
  %v653 = vpop.f32.mrf.mxu0
  %654 = vmatprep.mubr.f32.mxu0 0.0
  %655 = vmatmul.mubr.f32.gmra.mxu0 %v192
  %v656 = vpop.f32.mrf.mxu0
  %v657 = vadd.f32 %v152, %v656
  %v658 = vpop.f32.mrf.mxu0
  %659 = vmatprep.mubr.f32.mxu0 0.0
  %660 = vmatmul.mubr.f32.gmra.mxu0 %v195
  %v661 = vpop.f32.mrf.mxu0
  %v662 = vadd.f32 %v152, %v661
  %v663 = vpop.f32.mrf.mxu0
  %664 = vmatprep.mubr.f32.mxu0 0.0
  %665 = vmatmul.mubr.f32.gmra.mxu0 %v198
  %v666 = vpop.f32.mrf.mxu0
  %v667 = vadd.f32 %v152, %v666
  %v668 = vpop.f32.mrf.mxu0
  %669 = vmatprep.mubr.f32.mxu0 0.0
  %670 = vmatmul.mubr.f32.gmra.mxu0 %v201
  %v671 = vpop.f32.mrf.mxu0
  %v672 = vadd.f32 %v152, %v671
  %v673 = vpop.f32.mrf.mxu0
  %674 = vmatprep.mubr.f32.mxu0 0.0
  %675 = vmatmul.mubr.f32.gmra.mxu0 %v204
  %v676 = vpop.f32.mrf.mxu0
  %v677 = vadd.f32 %v152, %v676
  %v678 = vpop.f32.mrf.mxu0
  %679 = vmatprep.mubr.f32.mxu0 0.0
  %680 = vmatmul.mubr.f32.gmra.mxu0 %v207
  %v681 = vpop.f32.mrf.mxu0
  %v682 = vadd.f32 %v152, %v681
  %v683 = vpop.f32.mrf.mxu0
  %684 = vmatprep.mubr.f32.mxu0 0.0
  %685 = vmatmul.mubr.f32.gmra.mxu0 %v210
  %v686 = vpop.f32.mrf.mxu0
  %v687 = vadd.f32 %v152, %v686
  %v688 = vpop.f32.mrf.mxu0
  %689 = vmatprep.mubr.f32.mxu0 0.0
  %690 = vmatmul.mubr.f32.gmra.mxu0 %v213
  %v691 = vpop.f32.mrf.mxu0
  %v692 = vadd.f32 %v152, %v691
  %v693 = vpop.f32.mrf.mxu0
  %694 = vmatprep.mubr.f32.mxu0 0.0
  %695 = vmatmul.mubr.f32.gmra.mxu0 %v216
  %v696 = vpop.f32.mrf.mxu0
  %v697 = vadd.f32 %v152, %v696
  %v698 = vpop.f32.mrf.mxu0
  %699 = vmatprep.mubr.f32.mxu0 0.0
  %700 = vmatmul.mubr.f32.gmra.mxu0 %v219
  %v701 = vpop.f32.mrf.mxu0
  %v702 = vadd.f32 %v152, %v701
  %v703 = vpop.f32.mrf.mxu0
  %704 = vmatprep.mubr.f32.mxu0 0.0
  %705 = vmatmul.mubr.f32.gmra.mxu0 %v222
  %v706 = vpop.f32.mrf.mxu0
  %v707 = vadd.f32 %v152, %v706
  %v708 = vpop.f32.mrf.mxu0
  %709 = vmatprep.mubr.f32.mxu0 0.0
  %710 = vmatmul.mubr.f32.gmra.mxu0 %v225
  %v711 = vpop.f32.mrf.mxu0
  %v712 = vadd.f32 %v152, %v711
  %v713 = vpop.f32.mrf.mxu0
  %714 = vmatprep.mubr.f32.mxu0 0.0
  %715 = vmatmul.mubr.f32.gmra.mxu0 %v228
  %v716 = vpop.f32.mrf.mxu0
  %v717 = vadd.f32 %v152, %v716
  %v718 = vpop.f32.mrf.mxu0
  %719 = vmatprep.mubr.f32.mxu0 0.0
  %720 = vmatmul.mubr.f32.gmra.mxu0 %v231
  %v721 = vpop.f32.mrf.mxu0
  %v722 = vadd.f32 %v152, %v721
  %v723 = vpop.f32.mrf.mxu0
  %724 = vmatprep.mubr.f32.mxu0 0.0
  %725 = vmatmul.mubr.f32.gmra.mxu0 %v234
  %v726 = vpop.f32.mrf.mxu0
  %v727 = vadd.f32 %v152, %v726
  %v728 = vpop.f32.mrf.mxu0
  %729 = vmatprep.mubr.f32.mxu0 0.0
  %730 = vmatmul.mubr.f32.gmra.mxu0 %v237
  %v731 = vpop.f32.mrf.mxu0
  %v732 = vadd.f32 %v152, %v731
  %v733 = vpop.f32.mrf.mxu0
  %734 = vmatprep.mubr.f32.mxu0 0.0
  %735 = vmatmul.mubr.f32.gmra.mxu0 %v240
  %v736 = vpop.f32.mrf.mxu0
  %v737 = vadd.f32 %v152, %v736
  %v738 = vpop.f32.mrf.mxu0
  %739 = vmatprep.mubr.f32.mxu0 0.0
  %740 = vmatmul.mubr.f32.gmra.mxu0 %v243
  %v741 = vpop.f32.mrf.mxu0
  %v742 = vadd.f32 %v152, %v741
  %v743 = vpop.f32.mrf.mxu0
  %744 = vmatprep.mubr.f32.mxu0 0.0
  %745 = vmatmul.mubr.f32.gmra.mxu0 %v246
  %v746 = vpop.f32.mrf.mxu0
  %v747 = vadd.f32 %v152, %v746
  %v748 = vpop.f32.mrf.mxu0
  %749 = vmatprep.mubr.f32.mxu0 0.0
  %750 = vmatmul.mubr.f32.gmra.mxu0 %v249
  %v751 = vpop.f32.mrf.mxu0
  %v752 = vadd.f32 %v152, %v751
  %v753 = vpop.f32.mrf.mxu0
  %754 = vmatprep.mubr.f32.mxu0 0.0
  %755 = vmatmul.mubr.f32.gmra.mxu0 %v252
  %v756 = vpop.f32.mrf.mxu0
  %v757 = vadd.f32 %v152, %v756
  %v758 = vpop.f32.mrf.mxu0
  %759 = vmatprep.mubr.f32.mxu0 0.0
  %760 = vmatmul.mubr.f32.gmra.mxu0 %v255
  %v761 = vpop.f32.mrf.mxu0
  %v762 = vadd.f32 %v152, %v761
  %v763 = vpop.f32.mrf.mxu0
  %764 = vmatprep.mubr.f32.mxu0 0.0
  %765 = vmatmul.mubr.f32.gmra.mxu0 %v258
  %v766 = vpop.f32.mrf.mxu0
  %v767 = vadd.f32 %v152, %v766
  %v768 = vpop.f32.mrf.mxu0
  %769 = vmatprep.mubr.f32.mxu0 0.0
  %770 = vmatmul.mubr.f32.gmra.mxu0 %v261
  %v771 = vpop.f32.mrf.mxu0
  %v772 = vadd.f32 %v152, %v771
  %v773 = vpop.f32.mrf.mxu0
  %774 = vmatprep.mubr.f32.mxu0 0.0
  %775 = vmatmul.mubr.f32.gmra.mxu0 %v264
  %v776 = vpop.f32.mrf.mxu0
  %v777 = vadd.f32 %v152, %v776
  %v778 = vpop.f32.mrf.mxu0
  %779 = vmatprep.mubr.f32.mxu0 0.0
  %780 = vmatmul.mubr.f32.gmra.mxu0 %v267
  %v781 = vpop.f32.mrf.mxu0
  %v782 = vadd.f32 %v152, %v781
  %v783 = vpop.f32.mrf.mxu0
  %784 = vmatprep.mubr.f32.mxu0 0.0
  %785 = vmatmul.mubr.f32.gmra.mxu0 %v270
  %v786 = vpop.f32.mrf.mxu0
  %v787 = vadd.f32 %v152, %v786
  %v788 = vpop.f32.mrf.mxu0
  %789 = vmatprep.mubr.f32.mxu0 0.0
  %790 = vmatmul.mubr.f32.gmra.mxu0 %v273
  %v791 = vpop.f32.mrf.mxu0
  %v792 = vadd.f32 %v152, %v791
  %v793 = vpop.f32.mrf.mxu0
  %794 = vmatprep.mubr.f32.mxu0 0.0
  %795 = vmatmul.mubr.f32.gmra.mxu0 %v276
  %v796 = vpop.f32.mrf.mxu0
  %v797 = vadd.f32 %v152, %v796
  %v798 = vpop.f32.mrf.mxu0
  %799 = vmatprep.mubr.f32.mxu0 0.0
  %800 = vmatmul.mubr.f32.gmra.mxu0 %v279
  %v801 = vpop.f32.mrf.mxu0
  %v802 = vadd.f32 %v152, %v801
  %v803 = vpop.f32.mrf.mxu0
  %804 = vmatprep.mubr.f32.mxu0 0.0
  %805 = vmatmul.mubr.f32.gmra.mxu0 %v282
  %v806 = vpop.f32.mrf.mxu0
  %v807 = vadd.f32 %v152, %v806
  %v808 = vpop.f32.mrf.mxu0
  %809 = vmatprep.mubr.f32.mxu0 0.0
  %810 = vmatmul.mubr.f32.gmra.mxu0 %v285
  %v811 = vpop.f32.mrf.mxu0
  %v812 = vadd.f32 %v152, %v811
  %v813 = vpop.f32.mrf.mxu0
  %814 = vmatprep.mubr.f32.mxu0 0.0
  %815 = vmatmul.mubr.f32.gmra.mxu0 %v288
  %v816 = vpop.f32.mrf.mxu0
  %v817 = vadd.f32 %v152, %v816
  %v818 = vpop.f32.mrf.mxu0
  %819 = vmatprep.mubr.f32.mxu0 0.0
  %820 = vmatmul.mubr.f32.gmra.mxu0 %v291
  %v821 = vpop.f32.mrf.mxu0
  %v822 = vadd.f32 %v152, %v821
  %v823 = vpop.f32.mrf.mxu0
  %824 = vmatprep.mubr.f32.mxu0 0.0
  %825 = vmatmul.mubr.f32.gmra.mxu0 %v294
  %v826 = vpop.f32.mrf.mxu0
  %v827 = vadd.f32 %v152, %v826
  %v828 = vpop.f32.mrf.mxu0
  %829 = vmatprep.mubr.f32.mxu0 0.0
  %830 = vmatmul.mubr.f32.gmra.mxu0 %v297
  %v831 = vpop.f32.mrf.mxu0
  %v832 = vadd.f32 %v152, %v831
  %v833 = vpop.f32.mrf.mxu0
  %834 = vmatprep.mubr.f32.mxu0 0.0
  %835 = vmatmul.mubr.f32.gmra.mxu0 %v300
  %v836 = vpop.f32.mrf.mxu0
  %v837 = vadd.f32 %v152, %v836
  %v838 = vpop.f32.mrf.mxu0
  %839 = vmatprep.mubr.f32.mxu0 0.0
  %840 = vmatmul.mubr.f32.gmra.mxu0 %v303
  %v841 = vpop.f32.mrf.mxu0
  %v842 = vadd.f32 %v152, %v841
  %v843 = vpop.f32.mrf.mxu0
  %844 = vmatprep.mubr.f32.mxu0 0.0
  %845 = vmatmul.mubr.f32.gmra.mxu0 %v306
  %v846 = vpop.f32.mrf.mxu0
  %v847 = vadd.f32 %v152, %v846
  %v848 = vpop.f32.mrf.mxu0
  %849 = vmatprep.mubr.f32.mxu0 0.0
  %850 = vmatmul.mubr.f32.gmra.mxu0 %v309
  %v851 = vpop.f32.mrf.mxu0
  %v852 = vadd.f32 %v152, %v851
  %v853 = vpop.f32.mrf.mxu0
  %854 = vmatprep.mubr.f32.mxu0 0.0
  %855 = vmatmul.mubr.f32.gmra.mxu0 %v312
  %v856 = vpop.f32.mrf.mxu0
  %v857 = vadd.f32 %v152, %v856
  %v858 = vpop.f32.mrf.mxu0
  %859 = vmatprep.mubr.f32.mxu0 0.0
  %860 = vmatmul.mubr.f32.gmra.mxu0 %v315
  %v861 = vpop.f32.mrf.mxu0
  %v862 = vadd.f32 %v152, %v861
  %v863 = vpop.f32.mrf.mxu0
  %864 = vmatprep.mubr.f32.mxu0 0.0
  %865 = vmatmul.mubr.f32.gmra.mxu0 %v318
  %v866 = vpop.f32.mrf.mxu0
  %v867 = vadd.f32 %v152, %v866
  %v868 = vpop.f32.mrf.mxu0
  %869 = vmatprep.mubr.f32.mxu0 0.0
  %870 = vmatmul.mubr.f32.gmra.mxu0 %v321
  %v871 = vpop.f32.mrf.mxu0
  %v872 = vadd.f32 %v152, %v871
  %v873 = vpop.f32.mrf.mxu0
  %874 = vmatprep.mubr.f32.mxu0 0.0
  %875 = vmatmul.mubr.f32.gmra.mxu0 %v324
  %v876 = vpop.f32.mrf.mxu0
  %v877 = vadd.f32 %v152, %v876
  %v878 = vpop.f32.mrf.mxu0
  %879 = vmatprep.mubr.f32.mxu0 0.0
  %880 = vmatmul.mubr.f32.gmra.mxu0 %v327
  %v881 = vpop.f32.mrf.mxu0
  %v882 = vadd.f32 %v152, %v881
  %v883 = vpop.f32.mrf.mxu0
  %884 = vmatprep.mubr.f32.mxu0 0.0
  %885 = vmatmul.mubr.f32.gmra.mxu0 %v330
  %v886 = vpop.f32.mrf.mxu0
  %v887 = vadd.f32 %v152, %v886
  %v888 = vpop.f32.mrf.mxu0
  %889 = vmatprep.mubr.f32.mxu0 0.0
  %890 = vmatmul.mubr.f32.gmra.mxu0 %v333
  %v891 = vpop.f32.mrf.mxu0
  %v892 = vadd.f32 %v152, %v891
  %v893 = vpop.f32.mrf.mxu0
  %894 = vmatprep.mubr.f32.mxu0 0.0
  %895 = vmatmul.mubr.f32.gmra.mxu0 %v336
  %v896 = vpop.f32.mrf.mxu0
  %v897 = vadd.f32 %v152, %v896
  %v898 = vpop.f32.mrf.mxu0
  %899 = vmatprep.mubr.f32.mxu0 0.0
  %900 = vmatmul.mubr.f32.gmra.mxu0 %v339
  %v901 = vpop.f32.mrf.mxu0
  %v902 = vadd.f32 %v152, %v901
  %v903 = vpop.f32.mrf.mxu0
  %904 = vmatprep.mubr.f32.mxu0 0.0
  %905 = vmatmul.mubr.f32.gmra.mxu0 %v342
  %v906 = vpop.f32.mrf.mxu0
  %v907 = vadd.f32 %v152, %v906
  %v908 = vpop.f32.mrf.mxu0
  %909 = vmatprep.mubr.f32.mxu0 0.0
  %910 = vmatmul.mubr.f32.gmra.mxu0 %v345
  %v911 = vpop.f32.mrf.mxu0
  %v912 = vadd.f32 %v152, %v911
  %v913 = vpop.f32.mrf.mxu0
  %914 = vmatprep.mubr.f32.mxu0 0.0
  %915 = vmatmul.mubr.f32.gmra.mxu0 %v348
  %v916 = vpop.f32.mrf.mxu0
  %v917 = vadd.f32 %v152, %v916
  %v918 = vpop.f32.mrf.mxu0
  %919 = vmatprep.mubr.f32.mxu0 0.0
  %920 = vmatmul.mubr.f32.gmra.mxu0 %v351
  %v921 = vpop.f32.mrf.mxu0
  %v922 = vadd.f32 %v152, %v921
  %v923 = vpop.f32.mrf.mxu0
  %924 = vmatprep.mubr.f32.mxu0 0.0
  %925 = vmatmul.mubr.f32.gmra.mxu0 %v354
  %v926 = vpop.f32.mrf.mxu0
  %v927 = vadd.f32 %v152, %v926
  %v928 = vpop.f32.mrf.mxu0
  %929 = vmatprep.mubr.f32.mxu0 0.0
  %930 = vmatmul.mubr.f32.gmra.mxu0 %v357
  %v931 = vpop.f32.mrf.mxu0
  %v932 = vadd.f32 %v152, %v931
  %v933 = vpop.f32.mrf.mxu0
  %934 = vmatprep.mubr.f32.mxu0 0.0
  %935 = vmatmul.mubr.f32.gmra.mxu0 %v360
  %v936 = vpop.f32.mrf.mxu0
  %v937 = vadd.f32 %v152, %v936
  %v938 = vpop.f32.mrf.mxu0
  %939 = vmatprep.mubr.f32.mxu0 0.0
  %940 = vmatmul.mubr.f32.gmra.mxu0 %v363
  %v941 = vpop.f32.mrf.mxu0
  %v942 = vadd.f32 %v152, %v941
  %v943 = vpop.f32.mrf.mxu0
  %944 = vmatprep.mubr.f32.mxu0 0.0
  %945 = vmatmul.mubr.f32.gmra.mxu0 %v366
  %v946 = vpop.f32.mrf.mxu0
  %v947 = vadd.f32 %v152, %v946
  %v948 = vpop.f32.mrf.mxu0
  %949 = vmatprep.mubr.f32.mxu0 0.0
  %950 = vmatmul.mubr.f32.gmra.mxu0 %v369
  %v951 = vpop.f32.mrf.mxu0
  %v952 = vadd.f32 %v152, %v951
  %v953 = vpop.f32.mrf.mxu0
  %954 = vmatprep.mubr.f32.mxu0 0.0
  %955 = vmatmul.mubr.f32.gmra.mxu0 %v372
  %v956 = vpop.f32.mrf.mxu0
  %v957 = vadd.f32 %v152, %v956
  %v958 = vpop.f32.mrf.mxu0
  %959 = vmatprep.mubr.f32.mxu0 0.0
  %960 = vmatmul.mubr.f32.gmra.mxu0 %v375
  %v961 = vpop.f32.mrf.mxu0
  %v962 = vadd.f32 %v152, %v961
  %v963 = vpop.f32.mrf.mxu0
  %964 = vmatprep.mubr.f32.mxu0 0.0
  %965 = vmatmul.mubr.f32.gmra.mxu0 %v378
  %v966 = vpop.f32.mrf.mxu0
  %v967 = vadd.f32 %v152, %v966
  %v968 = vpop.f32.mrf.mxu0
  %969 = vmatprep.mubr.f32.mxu0 0.0
  %970 = vmatmul.mubr.f32.gmra.mxu0 %v381
  %v971 = vpop.f32.mrf.mxu0
  %v972 = vadd.f32 %v152, %v971
  %v973 = vpop.f32.mrf.mxu0
  %974 = vmatprep.mubr.f32.mxu0 0.0
  %975 = vmatmul.mubr.f32.gmra.mxu0 %v384
  %v976 = vpop.f32.mrf.mxu0
  %v977 = vadd.f32 %v152, %v976
  %v978 = vpop.f32.mrf.mxu0
  %979 = vmatprep.mubr.f32.mxu0 0.0
  %980 = vmatmul.mubr.f32.gmra.mxu0 %v387
  %v981 = vpop.f32.mrf.mxu0
  %v982 = vadd.f32 %v152, %v981
  %v983 = vpop.f32.mrf.mxu0
  %984 = vmatprep.mubr.f32.mxu0 0.0
  %985 = vmatmul.mubr.f32.gmra.mxu0 %v390
  %v986 = vpop.f32.mrf.mxu0
  %v987 = vadd.f32 %v152, %v986
  %v988 = vpop.f32.mrf.mxu0
  %989 = vmatprep.mubr.f32.mxu0 0.0
  %990 = vmatmul.mubr.f32.gmra.mxu0 %v393
  %v991 = vpop.f32.mrf.mxu0
  %v992 = vadd.f32 %v152, %v991
  %v993 = vpop.f32.mrf.mxu0
  %994 = vmatprep.mubr.f32.mxu0 0.0
  %995 = vmatmul.mubr.f32.gmra.mxu0 %v396
  %v996 = vpop.f32.mrf.mxu0
  %v997 = vadd.f32 %v152, %v996
  %v998 = vpop.f32.mrf.mxu0
  %999 = vmatprep.mubr.f32.mxu0 0.0
  %1000 = vmatmul.mubr.f32.gmra.mxu0 %v399
  %v1001 = vpop.f32.mrf.mxu0
  %v1002 = vadd.f32 %v152, %v1001
  %v1003 = vpop.f32.mrf.mxu0
  %1004 = vmatprep.mubr.f32.mxu0 0.0
  %1005 = vmatmul.mubr.f32.gmra.mxu0 %v402
  %v1006 = vpop.f32.mrf.mxu0
  %v1007 = vadd.f32 %v152, %v1006
  %v1008 = vpop.f32.mrf.mxu0
  %1009 = vmatprep.mubr.f32.mxu0 0.0
  %1010 = vmatmul.mubr.f32.gmra.mxu0 %v405
  %v1011 = vpop.f32.mrf.mxu0
  %v1012 = vadd.f32 %v152, %v1011
  %v1013 = vpop.f32.mrf.mxu0
  %1014 = vmatprep.mubr.f32.mxu0 0.0
  %1015 = vmatmul.mubr.f32.gmra.mxu0 %v408
  %v1016 = vpop.f32.mrf.mxu0
  %v1017 = vadd.f32 %v152, %v1016
  %v1018 = vpop.f32.mrf.mxu0
  %1019 = vmatprep.mubr.f32.mxu0 0.0
  %1020 = vmatmul.mubr.f32.gmra.mxu0 %v411
  %v1021 = vpop.f32.mrf.mxu0
  %v1022 = vadd.f32 %v152, %v1021
  %v1023 = vpop.f32.mrf.mxu0
  %1024 = vmatprep.mubr.f32.mxu0 0.0
  %1025 = vmatmul.mubr.f32.gmra.mxu0 %v414
  %v1026 = vpop.f32.mrf.mxu0
  %v1027 = vadd.f32 %v152, %v1026
  %v1028 = vpop.f32.mrf.mxu0
  %1029 = vmatprep.mubr.f32.mxu0 0.0
  %1030 = vmatmul.mubr.f32.gmra.mxu0 %v417
  %v1031 = vpop.f32.mrf.mxu0
  %v1032 = vadd.f32 %v152, %v1031
  %v1033 = vpop.f32.mrf.mxu0
  %1034 = vmatprep.mubr.f32.mxu0 0.0
  %1035 = vmatmul.mubr.f32.gmra.mxu0 %v420
  %v1036 = vpop.f32.mrf.mxu0
  %v1037 = vadd.f32 %v152, %v1036
  %v1038 = vpop.f32.mrf.mxu0
  %1039 = vmatprep.mubr.f32.mxu0 0.0
  %1040 = vmatmul.mubr.f32.gmra.mxu0 %v423
  %v1041 = vpop.f32.mrf.mxu0
  %v1042 = vadd.f32 %v152, %v1041
  %v1043 = vpop.f32.mrf.mxu0
  %1044 = vmatprep.mubr.f32.mxu0 0.0
  %1045 = vmatmul.mubr.f32.gmra.mxu0 %v426
  %v1046 = vpop.f32.mrf.mxu0
  %v1047 = vadd.f32 %v152, %v1046
  %v1048 = vpop.f32.mrf.mxu0
  %1049 = vmatprep.mubr.f32.mxu0 0.0
  %1050 = vmatmul.mubr.f32.gmra.mxu0 %v429
  %v1051 = vpop.f32.mrf.mxu0
  %v1052 = vadd.f32 %v152, %v1051
  %v1053 = vpop.f32.mrf.mxu0
  %1054 = vmatprep.mubr.f32.mxu0 0.0
  %1055 = vmatmul.mubr.f32.gmra.mxu0 %v432
  %v1056 = vpop.f32.mrf.mxu0
  %v1057 = vadd.f32 %v152, %v1056
  %v1058 = vpop.f32.mrf.mxu0
  %1059 = vmatprep.mubr.f32.mxu0 0.0
  %1060 = vmatmul.mubr.f32.gmra.mxu0 %v435
  %v1061 = vpop.f32.mrf.mxu0
  %v1062 = vadd.f32 %v152, %v1061
  %v1063 = vpop.f32.mrf.mxu0
  %1064 = vmatprep.mubr.f32.mxu0 0.0
  %1065 = vmatmul.mubr.f32.gmra.mxu0 %v438
  %v1066 = vpop.f32.mrf.mxu0
  %v1067 = vadd.f32 %v152, %v1066
  %v1068 = vpop.f32.mrf.mxu0
  %1069 = vmatprep.mubr.f32.mxu0 0.0
  %1070 = vmatmul.mubr.f32.gmra.mxu0 %v441
  %v1071 = vpop.f32.mrf.mxu0
  %v1072 = vadd.f32 %v152, %v1071
  %v1073 = vpop.f32.mrf.mxu0
  %1074 = vmatprep.mubr.f32.mxu0 0.0
  %1075 = vmatmul.mubr.f32.gmra.mxu0 %v444
  %v1076 = vpop.f32.mrf.mxu0
  %v1077 = vadd.f32 %v152, %v1076
  %v1078 = vpop.f32.mrf.mxu0
  %1079 = vmatprep.mubr.f32.mxu0 0.0
  %1080 = vmatmul.mubr.f32.gmra.mxu0 %v447
  %v1081 = vpop.f32.mrf.mxu0
  %v1082 = vadd.f32 %v152, %v1081
  %v1083 = vpop.f32.mrf.mxu0
  %1084 = vmatprep.mubr.f32.mxu0 0.0
  %1085 = vmatmul.mubr.f32.gmra.mxu0 %v450
  %v1086 = vpop.f32.mrf.mxu0
  %v1087 = vadd.f32 %v152, %v1086
  %v1088 = vpop.f32.mrf.mxu0
  %1089 = vmatprep.mubr.f32.mxu0 0.0
  %1090 = vmatmul.mubr.f32.gmra.mxu0 %v453
  %v1091 = vpop.f32.mrf.mxu0
  %v1092 = vadd.f32 %v152, %v1091
  %v1093 = vpop.f32.mrf.mxu0
  %1094 = vmatprep.mubr.f32.mxu0 0.0
  %1095 = vmatmul.mubr.f32.gmra.mxu0 %v456
  %v1096 = vpop.f32.mrf.mxu0
  %v1097 = vadd.f32 %v152, %v1096
  %v1098 = vpop.f32.mrf.mxu0
  %1099 = vmatprep.mubr.f32.mxu0 0.0
  %1100 = vmatmul.mubr.f32.gmra.mxu0 %v459
  %v1101 = vpop.f32.mrf.mxu0
  %v1102 = vadd.f32 %v152, %v1101
  %v1103 = vpop.f32.mrf.mxu0
  %1104 = vmatprep.mubr.f32.mxu0 0.0
  %1105 = vmatmul.mubr.f32.gmra.mxu0 %v462
  %v1106 = vpop.f32.mrf.mxu0
  %v1107 = vadd.f32 %v152, %v1106
  %v1108 = vpop.f32.mrf.mxu0
  %1109 = vmatprep.mubr.f32.mxu0 0.0
  %1110 = vmatmul.mubr.f32.gmra.mxu0 %v465
  %v1111 = vpop.f32.mrf.mxu0
  %v1112 = vadd.f32 %v152, %v1111
  %v1113 = vpop.f32.mrf.mxu0
  %1114 = vmatprep.mubr.f32.mxu0 0.0
  %1115 = vmatmul.mubr.f32.gmra.mxu0 %v468
  %v1116 = vpop.f32.mrf.mxu0
  %v1117 = vadd.f32 %v152, %v1116
  %v1118 = vpop.f32.mrf.mxu0
  %1119 = vmatprep.mubr.f32.mxu0 0.0
  %1120 = vmatmul.mubr.f32.gmra.mxu0 %v471
  %v1121 = vpop.f32.mrf.mxu0
  %v1122 = vadd.f32 %v152, %v1121
  %v1123 = vpop.f32.mrf.mxu0
  %1124 = vmatprep.mubr.f32.mxu0 0.0
  %1125 = vmatmul.mubr.f32.gmra.mxu0 %v474
  %v1126 = vpop.f32.mrf.mxu0
  %v1127 = vadd.f32 %v152, %v1126
  %v1128 = vpop.f32.mrf.mxu0
  %1129 = vmatprep.mubr.f32.mxu0 0.0
  %1130 = vmatmul.mubr.f32.gmra.mxu0 %v477
  %v1131 = vpop.f32.mrf.mxu0
  %v1132 = vadd.f32 %v152, %v1131
  %v1133 = vpop.f32.mrf.mxu0
  %1134 = vmatprep.mubr.f32.mxu0 0.0
  %1135 = vmatmul.mubr.f32.gmra.mxu0 %v480
  %v1136 = vpop.f32.mrf.mxu0
  %v1137 = vadd.f32 %v152, %v1136
  %v1138 = vpop.f32.mrf.mxu0
  %1139 = vmatprep.mubr.f32.mxu0 0.0
  %1140 = vmatmul.mubr.f32.gmra.mxu0 %v483
  %v1141 = vpop.f32.mrf.mxu0
  %v1142 = vadd.f32 %v152, %v1141
  %v1143 = vpop.f32.mrf.mxu0
  %1144 = vmatprep.mubr.f32.mxu0 0.0
  %1145 = vmatmul.mubr.f32.gmra.mxu0 %v486
  %v1146 = vpop.f32.mrf.mxu0
  %v1147 = vadd.f32 %v152, %v1146
  %v1148 = vpop.f32.mrf.mxu0
  %1149 = vmatprep.mubr.f32.mxu0 0.0
  %1150 = vmatmul.mubr.f32.gmra.mxu0 %v489
  %v1151 = vpop.f32.mrf.mxu0
  %v1152 = vadd.f32 %v152, %v1151
  %v1153 = vpop.f32.mrf.mxu0
  %1154 = vmatprep.mubr.f32.mxu0 0.0
  %1155 = vmatmul.mubr.f32.gmra.mxu0 %v492
  %v1156 = vpop.f32.mrf.mxu0
  %v1157 = vadd.f32 %v152, %v1156
  %v1158 = vpop.f32.mrf.mxu0
  %1159 = vmatprep.mubr.f32.mxu0 0.0
  %1160 = vmatmul.mubr.f32.gmra.mxu0 %v495
  %v1161 = vpop.f32.mrf.mxu0
  %v1162 = vadd.f32 %v152, %v1161
  %v1163 = vpop.f32.mrf.mxu0
  %1164 = vmatprep.mubr.f32.mxu0 0.0
  %1165 = vmatmul.mubr.f32.gmra.mxu0 %v498
  %v1166 = vpop.f32.mrf.mxu0
  %v1167 = vadd.f32 %v152, %v1166
  %v1168 = vpop.f32.mrf.mxu0
  %1169 = vmatprep.mubr.f32.mxu0 0.0
  %1170 = vmatmul.mubr.f32.gmra.mxu0 %v501
  %v1171 = vpop.f32.mrf.mxu0
  %v1172 = vadd.f32 %v152, %v1171
  %v1173 = vpop.f32.mrf.mxu0
  %1174 = vmatprep.mubr.f32.mxu0 0.0
  %1175 = vmatmul.mubr.f32.gmra.mxu0 %v504
  %v1176 = vpop.f32.mrf.mxu0
  %v1177 = vadd.f32 %v152, %v1176
  %v1178 = vpop.f32.mrf.mxu0
  %1179 = vmatprep.mubr.f32.mxu0 0.0
  %1180 = vmatmul.mubr.f32.gmra.mxu0 %v507
  %v1181 = vpop.f32.mrf.mxu0
  %v1182 = vadd.f32 %v152, %v1181
  %v1183 = vpop.f32.mrf.mxu0
  %1184 = vmatprep.mubr.f32.mxu0 0.0
  %1185 = vmatmul.mubr.f32.gmra.mxu0 %v510
  %v1186 = vpop.f32.mrf.mxu0
  %v1187 = vadd.f32 %v152, %v1186
  %v1188 = vpop.f32.mrf.mxu0
  %1189 = vmatprep.mubr.f32.mxu0 0.0
  %1190 = vmatmul.mubr.f32.gmra.mxu0 %v513
  %v1191 = vpop.f32.mrf.mxu0
  %v1192 = vadd.f32 %v152, %v1191
  %v1193 = vpop.f32.mrf.mxu0
  %1194 = vmatprep.mubr.f32.mxu0 0.0
  %1195 = vmatmul.mubr.f32.gmra.mxu0 %v516
  %v1196 = vpop.f32.mrf.mxu0
  %v1197 = vadd.f32 %v152, %v1196
  %v1198 = vpop.f32.mrf.mxu0
  %1199 = vmatprep.mubr.f32.mxu0 0.0
  %1200 = vmatmul.mubr.f32.gmra.mxu0 %v519
  %v1201 = vpop.f32.mrf.mxu0
  %v1202 = vadd.f32 %v152, %v1201
  %v1203 = vpop.f32.mrf.mxu0
  %1204 = vmatprep.mubr.f32.mxu0 0.0
  %1205 = vmatmul.mubr.f32.gmra.mxu0 %v522
  %v1206 = vpop.f32.mrf.mxu0
  %v1207 = vadd.f32 %v152, %v1206
  %v1208 = vpop.f32.mrf.mxu0
  %1209 = vmatprep.mubr.f32.mxu0 0.0
  %1210 = vmatmul.mubr.f32.gmra.mxu0 %v525
  %v1211 = vpop.f32.mrf.mxu0
  %v1212 = vadd.f32 %v152, %v1211
  %v1213 = vpop.f32.mrf.mxu0
  %1214 = vmatprep.mubr.f32.mxu0 0.0
  %1215 = vmatmul.mubr.f32.gmra.mxu0 %v528
  %v1216 = vpop.f32.mrf.mxu0
  %v1217 = vadd.f32 %v152, %v1216
  %v1218 = vpop.f32.mrf.mxu0
  %1219 = vdwg.mxu0
  %v1220 = vmax.f32 %v597, 0.0
  %v1221 = vmax.f32 %v602, 0.0
  %v1222 = vmax.f32 %v607, 0.0
  %v1223 = vmax.f32 %v612, 0.0
  %v1224 = vmax.f32 %v617, 0.0
  %v1225 = vmax.f32 %v622, 0.0
  %v1226 = vmax.f32 %v627, 0.0
  %v1227 = vmax.f32 %v632, 0.0
  %v1228 = vmax.f32 %v637, 0.0
  %v1229 = vmax.f32 %v642, 0.0
  %v1230 = vmax.f32 %v647, 0.0
  %v1231 = vmax.f32 %v652, 0.0
  %v1232 = vmax.f32 %v657, 0.0
  %v1233 = vmax.f32 %v662, 0.0
  %v1234 = vmax.f32 %v667, 0.0
  %v1235 = vmax.f32 %v672, 0.0
  %v1236 = vmax.f32 %v677, 0.0
  %v1237 = vmax.f32 %v682, 0.0
  %v1238 = vmax.f32 %v687, 0.0
  %v1239 = vmax.f32 %v692, 0.0
  %v1240 = vmax.f32 %v697, 0.0
  %v1241 = vmax.f32 %v702, 0.0
  %v1242 = vmax.f32 %v707, 0.0
  %v1243 = vmax.f32 %v712, 0.0
  %v1244 = vmax.f32 %v717, 0.0
  %v1245 = vmax.f32 %v722, 0.0
  %v1246 = vmax.f32 %v727, 0.0
  %v1247 = vmax.f32 %v732, 0.0
  %v1248 = vmax.f32 %v737, 0.0
  %v1249 = vmax.f32 %v742, 0.0
  %v1250 = vmax.f32 %v747, 0.0
  %v1251 = vmax.f32 %v752, 0.0
  %v1252 = vmax.f32 %v757, 0.0
  %v1253 = vmax.f32 %v762, 0.0
  %v1254 = vmax.f32 %v767, 0.0
  %v1255 = vmax.f32 %v772, 0.0
  %v1256 = vmax.f32 %v777, 0.0
  %v1257 = vmax.f32 %v782, 0.0
  %v1258 = vmax.f32 %v787, 0.0
  %v1259 = vmax.f32 %v792, 0.0
  %v1260 = vmax.f32 %v797, 0.0
  %v1261 = vmax.f32 %v802, 0.0
  %v1262 = vmax.f32 %v807, 0.0
  %v1263 = vmax.f32 %v812, 0.0
  %v1264 = vmax.f32 %v817, 0.0
  %v1265 = vmax.f32 %v822, 0.0
  %v1266 = vmax.f32 %v827, 0.0
  %v1267 = vmax.f32 %v832, 0.0
  %v1268 = vmax.f32 %v837, 0.0
  %v1269 = vmax.f32 %v842, 0.0
  %v1270 = vmax.f32 %v847, 0.0
  %v1271 = vmax.f32 %v852, 0.0
  %v1272 = vmax.f32 %v857, 0.0
  %v1273 = vmax.f32 %v862, 0.0
  %v1274 = vmax.f32 %v867, 0.0
  %v1275 = vmax.f32 %v872, 0.0
  %v1276 = vmax.f32 %v877, 0.0
  %v1277 = vmax.f32 %v882, 0.0
  %v1278 = vmax.f32 %v887, 0.0
  %v1279 = vmax.f32 %v892, 0.0
  %v1280 = vmax.f32 %v897, 0.0
  %v1281 = vmax.f32 %v902, 0.0
  %v1282 = vmax.f32 %v907, 0.0
  %v1283 = vmax.f32 %v912, 0.0
  %v1284 = vmax.f32 %v917, 0.0
  %v1285 = vmax.f32 %v922, 0.0
  %v1286 = vmax.f32 %v927, 0.0
  %v1287 = vmax.f32 %v932, 0.0
  %v1288 = vmax.f32 %v937, 0.0
  %v1289 = vmax.f32 %v942, 0.0
  %v1290 = vmax.f32 %v947, 0.0
  %v1291 = vmax.f32 %v952, 0.0
  %v1292 = vmax.f32 %v957, 0.0
  %v1293 = vmax.f32 %v962, 0.0
  %v1294 = vmax.f32 %v967, 0.0
  %v1295 = vmax.f32 %v972, 0.0
  %v1296 = vmax.f32 %v977, 0.0
  %v1297 = vmax.f32 %v982, 0.0
  %v1298 = vmax.f32 %v987, 0.0
  %v1299 = vmax.f32 %v992, 0.0
  %v1300 = vmax.f32 %v997, 0.0
  %v1301 = vmax.f32 %v1002, 0.0
  %v1302 = vmax.f32 %v1007, 0.0
  %v1303 = vmax.f32 %v1012, 0.0
  %v1304 = vmax.f32 %v1017, 0.0
  %v1305 = vmax.f32 %v1022, 0.0
  %v1306 = vmax.f32 %v1027, 0.0
  %v1307 = vmax.f32 %v1032, 0.0
  %v1308 = vmax.f32 %v1037, 0.0
  %v1309 = vmax.f32 %v1042, 0.0
  %v1310 = vmax.f32 %v1047, 0.0
  %v1311 = vmax.f32 %v1052, 0.0
  %v1312 = vmax.f32 %v1057, 0.0
  %v1313 = vmax.f32 %v1062, 0.0
  %v1314 = vmax.f32 %v1067, 0.0
  %v1315 = vmax.f32 %v1072, 0.0
  %v1316 = vmax.f32 %v1077, 0.0
  %v1317 = vmax.f32 %v1082, 0.0
  %v1318 = vmax.f32 %v1087, 0.0
  %v1319 = vmax.f32 %v1092, 0.0
  %v1320 = vmax.f32 %v1097, 0.0
  %v1321 = vmax.f32 %v1102, 0.0
  %v1322 = vmax.f32 %v1107, 0.0
  %v1323 = vmax.f32 %v1112, 0.0
  %v1324 = vmax.f32 %v1117, 0.0
  %v1325 = vmax.f32 %v1122, 0.0
  %v1326 = vmax.f32 %v1127, 0.0
  %v1327 = vmax.f32 %v1132, 0.0
  %v1328 = vmax.f32 %v1137, 0.0
  %v1329 = vmax.f32 %v1142, 0.0
  %v1330 = vmax.f32 %v1147, 0.0
  %v1331 = vmax.f32 %v1152, 0.0
  %v1332 = vmax.f32 %v1157, 0.0
  %v1333 = vmax.f32 %v1162, 0.0
  %v1334 = vmax.f32 %v1167, 0.0
  %v1335 = vmax.f32 %v1172, 0.0
  %v1336 = vmax.f32 %v1177, 0.0
  %v1337 = vmax.f32 %v1182, 0.0
  %v1338 = vmax.f32 %v1187, 0.0
  %v1339 = vmax.f32 %v1192, 0.0
  %v1340 = vmax.f32 %v1197, 0.0
  %v1341 = vmax.f32 %v1202, 0.0
  %v1342 = vmax.f32 %v1207, 0.0
  %v1343 = vmax.f32 %v1212, 0.0
  %v1344 = vmax.f32 %v1217, 0.0
  %v1345 = vld [vmem:[%s3] sm:$0xff]
  %v1346 = vld [vmem:[%s3 + $0x8] sm:$0xff]
  %v1347 = vld [vmem:[%s3 + $0x10] sm:$0xff]
  %v1348 = vld [vmem:[%s3 + $0x18] sm:$0xff]
  %v1349 = vld [vmem:[%s4] sm:$0x1]
  %v1351 = vlaneseq
  %v1352 = vshrl.u32 %v1351, 7
  %v1353 = vsub.s32 0, %v1352
  %v1354 = vrot.slane %v1349, %v1353
  %vm1356 = vcmask 261120
  %v1358 = vsel %vm1356, %v1220, 0
  %v1361 = vsel %vm1356, %v1221, 0
  %v1364 = vsel %vm1356, %v1222, 0
  %v1367 = vsel %vm1356, %v1223, 0
  %v1370 = vsel %vm1356, %v1224, 0
  %v1373 = vsel %vm1356, %v1225, 0
  %v1376 = vsel %vm1356, %v1226, 0
  %v1379 = vsel %vm1356, %v1227, 0
  %v1382 = vsel %vm1356, %v1228, 0
  %v1385 = vsel %vm1356, %v1229, 0
  %v1388 = vsel %vm1356, %v1230, 0
  %v1391 = vsel %vm1356, %v1231, 0
  %v1394 = vsel %vm1356, %v1232, 0
  %v1397 = vsel %vm1356, %v1233, 0
  %v1400 = vsel %vm1356, %v1234, 0
  %v1403 = vsel %vm1356, %v1235, 0
  %v1406 = vsel %vm1356, %v1236, 0
  %v1409 = vsel %vm1356, %v1237, 0
  %v1412 = vsel %vm1356, %v1238, 0
  %v1415 = vsel %vm1356, %v1239, 0
  %v1418 = vsel %vm1356, %v1240, 0
  %v1421 = vsel %vm1356, %v1241, 0
  %v1424 = vsel %vm1356, %v1242, 0
  %v1427 = vsel %vm1356, %v1243, 0
  %v1430 = vsel %vm1356, %v1244, 0
  %v1433 = vsel %vm1356, %v1245, 0
  %v1436 = vsel %vm1356, %v1246, 0
  %v1439 = vsel %vm1356, %v1247, 0
  %v1442 = vsel %vm1356, %v1248, 0
  %v1445 = vsel %vm1356, %v1249, 0
  %v1448 = vsel %vm1356, %v1250, 0
  %v1451 = vsel %vm1356, %v1251, 0
  %v1454 = vsel %vm1356, %v1252, 0
  %v1457 = vsel %vm1356, %v1253, 0
  %v1460 = vsel %vm1356, %v1254, 0
  %v1463 = vsel %vm1356, %v1255, 0
  %v1466 = vsel %vm1356, %v1256, 0
  %v1469 = vsel %vm1356, %v1257, 0
  %v1472 = vsel %vm1356, %v1258, 0
  %v1475 = vsel %vm1356, %v1259, 0
  %v1478 = vsel %vm1356, %v1260, 0
  %v1481 = vsel %vm1356, %v1261, 0
  %v1484 = vsel %vm1356, %v1262, 0
  %v1487 = vsel %vm1356, %v1263, 0
  %v1490 = vsel %vm1356, %v1264, 0
  %v1493 = vsel %vm1356, %v1265, 0
  %v1496 = vsel %vm1356, %v1266, 0
  %v1499 = vsel %vm1356, %v1267, 0
  %v1502 = vsel %vm1356, %v1268, 0
  %v1505 = vsel %vm1356, %v1269, 0
  %v1508 = vsel %vm1356, %v1270, 0
  %v1511 = vsel %vm1356, %v1271, 0
  %v1514 = vsel %vm1356, %v1272, 0
  %v1517 = vsel %vm1356, %v1273, 0
  %v1520 = vsel %vm1356, %v1274, 0
  %v1523 = vsel %vm1356, %v1275, 0
  %v1526 = vsel %vm1356, %v1276, 0
  %v1529 = vsel %vm1356, %v1277, 0
  %v1532 = vsel %vm1356, %v1278, 0
  %v1535 = vsel %vm1356, %v1279, 0
  %v1538 = vsel %vm1356, %v1280, 0
  %v1541 = vsel %vm1356, %v1281, 0
  %v1544 = vsel %vm1356, %v1282, 0
  %v1547 = vsel %vm1356, %v1283, 0
  %v1550 = vsel %vm1356, %v1284, 0
  %v1553 = vsel %vm1356, %v1285, 0
  %v1556 = vsel %vm1356, %v1286, 0
  %v1559 = vsel %vm1356, %v1287, 0
  %v1562 = vsel %vm1356, %v1288, 0
  %v1565 = vsel %vm1356, %v1289, 0
  %v1568 = vsel %vm1356, %v1290, 0
  %v1571 = vsel %vm1356, %v1291, 0
  %v1574 = vsel %vm1356, %v1292, 0
  %v1577 = vsel %vm1356, %v1293, 0
  %v1580 = vsel %vm1356, %v1294, 0
  %v1583 = vsel %vm1356, %v1295, 0
  %v1586 = vsel %vm1356, %v1296, 0
  %v1589 = vsel %vm1356, %v1297, 0
  %v1592 = vsel %vm1356, %v1298, 0
  %v1595 = vsel %vm1356, %v1299, 0
  %v1598 = vsel %vm1356, %v1300, 0
  %v1601 = vsel %vm1356, %v1301, 0
  %v1604 = vsel %vm1356, %v1302, 0
  %v1607 = vsel %vm1356, %v1303, 0
  %v1610 = vsel %vm1356, %v1304, 0
  %v1613 = vsel %vm1356, %v1305, 0
  %v1616 = vsel %vm1356, %v1306, 0
  %v1619 = vsel %vm1356, %v1307, 0
  %v1622 = vsel %vm1356, %v1308, 0
  %v1625 = vsel %vm1356, %v1309, 0
  %v1628 = vsel %vm1356, %v1310, 0
  %v1631 = vsel %vm1356, %v1311, 0
  %v1634 = vsel %vm1356, %v1312, 0
  %v1637 = vsel %vm1356, %v1313, 0
  %v1640 = vsel %vm1356, %v1314, 0
  %v1643 = vsel %vm1356, %v1315, 0
  %v1646 = vsel %vm1356, %v1316, 0
  %v1649 = vsel %vm1356, %v1317, 0
  %v1652 = vsel %vm1356, %v1318, 0
  %v1655 = vsel %vm1356, %v1319, 0
  %v1658 = vsel %vm1356, %v1320, 0
  %v1661 = vsel %vm1356, %v1321, 0
  %v1664 = vsel %vm1356, %v1322, 0
  %v1667 = vsel %vm1356, %v1323, 0
  %v1670 = vsel %vm1356, %v1324, 0
  %v1673 = vsel %vm1356, %v1325, 0
  %v1676 = vsel %vm1356, %v1326, 0
  %v1679 = vsel %vm1356, %v1327, 0
  %v1682 = vsel %vm1356, %v1328, 0
  %v1685 = vsel %vm1356, %v1329, 0
  %v1688 = vsel %vm1356, %v1330, 0
  %v1691 = vsel %vm1356, %v1331, 0
  %v1694 = vsel %vm1356, %v1332, 0
  %v1697 = vsel %vm1356, %v1333, 0
  %v1700 = vsel %vm1356, %v1334, 0
  %v1703 = vsel %vm1356, %v1335, 0
  %v1706 = vsel %vm1356, %v1336, 0
  %v1709 = vsel %vm1356, %v1337, 0
  %v1712 = vsel %vm1356, %v1338, 0
  %v1715 = vsel %vm1356, %v1339, 0
  %v1718 = vsel %vm1356, %v1340, 0
  %v1721 = vsel %vm1356, %v1341, 0
  %v1724 = vsel %vm1356, %v1342, 0
  %v1727 = vsel %vm1356, %v1343, 0
  %v1730 = vsel %vm1356, %v1344, 0
  %1732 = vmatprep.subr.mxu0 0.0
  %1733 = vmatpush1.msra.mxu0 0.0
  %1734 = vmatprep.subr.mxu0 0.0
  %1735 = vmatpush1.msra.mxu0 0.0
  %1736 = vmatprep.subr.mxu0 0.0
  %1737 = vmatpush1.msra.mxu0 0.0
  %1738 = vmatprep.subr.mxu0 0.0
  %1739 = vmatpush1.msra.mxu0 0.0
  %1740 = vmatprep.subr.mxu0 0.0
  %1741 = vmatpush1.msra.mxu0 0.0
  %1742 = vmatprep.subr.mxu0 0.0
  %1743 = vmatpush1.msra.mxu0 0.0
  %1744 = vmatprep.subr.mxu0 0.0
  %1745 = vmatpush1.msra.mxu0 0.0
  %1746 = vmatprep.subr.mxu0 0.0
  %1747 = vmatpush1.msra.mxu0 0.0
  %1748 = vmatprep.subr.mxu0 0.0
  %1749 = vmatpush1.msra.mxu0 0.0
  %1750 = vmatprep.subr.mxu0 0.0
  %1751 = vmatpush1.msra.mxu0 0.0
  %1752 = vmatprep.subr.mxu0 0.0
  %1753 = vmatpush1.msra.mxu0 0.0
  %1754 = vmatprep.subr.mxu0 0.0
  %1755 = vmatpush1.msra.mxu0 0.0
  %1756 = vmatprep.subr.mxu0 0.0
  %1757 = vmatpush1.msra.mxu0 %v1348
  %1758 = vmatprep.subr.mxu0 0.0
  %1759 = vmatpush1.msra.mxu0 %v1347
  %1760 = vmatprep.subr.mxu0 0.0
  %1761 = vmatpush1.msra.mxu0 %v1346
  %1762 = vmatprep.subr.mxu0 0.0
  %1763 = vmatpush1.msra.mxu0 %v1345
  %1764 = vmatprep.subr.mxu0 0.0
  %1765 = vmatpush2.msra.mxu0 0.0
  %1766 = vmatprep.subr.mxu0 0.0
  %1767 = vmatpush2.msra.mxu0 0.0
  %1768 = vmatprep.subr.mxu0 0.0
  %1769 = vmatpush2.msra.mxu0 0.0
  %1770 = vmatprep.subr.mxu0 0.0
  %1771 = vmatpush2.msra.mxu0 0.0
  %1772 = vmatprep.subr.mxu0 0.0
  %1773 = vmatpush2.msra.mxu0 0.0
  %1774 = vmatprep.subr.mxu0 0.0
  %1775 = vmatpush2.msra.mxu0 0.0
  %1776 = vmatprep.subr.mxu0 0.0
  %1777 = vmatpush2.msra.mxu0 0.0
  %1778 = vmatprep.subr.mxu0 0.0
  %1779 = vmatpush2.msra.mxu0 0.0
  %1780 = vmatprep.subr.mxu0 0.0
  %1781 = vmatpush2.msra.mxu0 0.0
  %1782 = vmatprep.subr.mxu0 0.0
  %1783 = vmatpush2.msra.mxu0 0.0
  %1784 = vmatprep.subr.mxu0 0.0
  %1785 = vmatpush2.msra.mxu0 0.0
  %1786 = vmatprep.subr.mxu0 0.0
  %1787 = vmatpush2.msra.mxu0 0.0
  %1788 = vmatprep.subr.mxu0 0.0
  %1789 = vmatpush2.msra.mxu0 0.0
  %1790 = vmatprep.subr.mxu0 0.0
  %1791 = vmatpush2.msra.mxu0 0.0
  %1792 = vmatprep.subr.mxu0 0.0
  %1793 = vmatpush2.msra.mxu0 0.0
  %1794 = vmatprep.subr.mxu0 0.0
  %1795 = vmatpush2.msra.mxu0 0.0
  %1796 = vmatprep.mubr.f32.mxu0 0.0
  %1797 = vmatmul.mubr.f32.gmra.mxu0 %v1358
  %v1798 = vpop.f32.mrf.mxu0
  %v1799 = vadd.f32 %v1354, %v1798
  %v1800 = vpop.f32.mrf.mxu0
  %1801 = vmatprep.mubr.f32.mxu0 0.0
  %1802 = vmatmul.mubr.f32.gmra.mxu0 %v1361
  %v1803 = vpop.f32.mrf.mxu0
  %v1804 = vadd.f32 %v1354, %v1803
  %v1805 = vpop.f32.mrf.mxu0
  %1806 = vmatprep.mubr.f32.mxu0 0.0
  %1807 = vmatmul.mubr.f32.gmra.mxu0 %v1364
  %v1808 = vpop.f32.mrf.mxu0
  %v1809 = vadd.f32 %v1354, %v1808
  %v1810 = vpop.f32.mrf.mxu0
  %1811 = vmatprep.mubr.f32.mxu0 0.0
  %1812 = vmatmul.mubr.f32.gmra.mxu0 %v1367
  %v1813 = vpop.f32.mrf.mxu0
  %v1814 = vadd.f32 %v1354, %v1813
  %v1815 = vpop.f32.mrf.mxu0
  %1816 = vmatprep.mubr.f32.mxu0 0.0
  %1817 = vmatmul.mubr.f32.gmra.mxu0 %v1370
  %v1818 = vpop.f32.mrf.mxu0
  %v1819 = vadd.f32 %v1354, %v1818
  %v1820 = vpop.f32.mrf.mxu0
  %1821 = vmatprep.mubr.f32.mxu0 0.0
  %1822 = vmatmul.mubr.f32.gmra.mxu0 %v1373
  %v1823 = vpop.f32.mrf.mxu0
  %v1824 = vadd.f32 %v1354, %v1823
  %v1825 = vpop.f32.mrf.mxu0
  %1826 = vmatprep.mubr.f32.mxu0 0.0
  %1827 = vmatmul.mubr.f32.gmra.mxu0 %v1376
  %v1828 = vpop.f32.mrf.mxu0
  %v1829 = vadd.f32 %v1354, %v1828
  %v1830 = vpop.f32.mrf.mxu0
  %1831 = vmatprep.mubr.f32.mxu0 0.0
  %1832 = vmatmul.mubr.f32.gmra.mxu0 %v1379
  %v1833 = vpop.f32.mrf.mxu0
  %v1834 = vadd.f32 %v1354, %v1833
  %v1835 = vpop.f32.mrf.mxu0
  %1836 = vmatprep.mubr.f32.mxu0 0.0
  %1837 = vmatmul.mubr.f32.gmra.mxu0 %v1382
  %v1838 = vpop.f32.mrf.mxu0
  %v1839 = vadd.f32 %v1354, %v1838
  %v1840 = vpop.f32.mrf.mxu0
  %1841 = vmatprep.mubr.f32.mxu0 0.0
  %1842 = vmatmul.mubr.f32.gmra.mxu0 %v1385
  %v1843 = vpop.f32.mrf.mxu0
  %v1844 = vadd.f32 %v1354, %v1843
  %v1845 = vpop.f32.mrf.mxu0
  %1846 = vmatprep.mubr.f32.mxu0 0.0
  %1847 = vmatmul.mubr.f32.gmra.mxu0 %v1388
  %v1848 = vpop.f32.mrf.mxu0
  %v1849 = vadd.f32 %v1354, %v1848
  %v1850 = vpop.f32.mrf.mxu0
  %1851 = vmatprep.mubr.f32.mxu0 0.0
  %1852 = vmatmul.mubr.f32.gmra.mxu0 %v1391
  %v1853 = vpop.f32.mrf.mxu0
  %v1854 = vadd.f32 %v1354, %v1853
  %v1855 = vpop.f32.mrf.mxu0
  %1856 = vmatprep.mubr.f32.mxu0 0.0
  %1857 = vmatmul.mubr.f32.gmra.mxu0 %v1394
  %v1858 = vpop.f32.mrf.mxu0
  %v1859 = vadd.f32 %v1354, %v1858
  %v1860 = vpop.f32.mrf.mxu0
  %1861 = vmatprep.mubr.f32.mxu0 0.0
  %1862 = vmatmul.mubr.f32.gmra.mxu0 %v1397
  %v1863 = vpop.f32.mrf.mxu0
  %v1864 = vadd.f32 %v1354, %v1863
  %v1865 = vpop.f32.mrf.mxu0
  %1866 = vmatprep.mubr.f32.mxu0 0.0
  %1867 = vmatmul.mubr.f32.gmra.mxu0 %v1400
  %v1868 = vpop.f32.mrf.mxu0
  %v1869 = vadd.f32 %v1354, %v1868
  %v1870 = vpop.f32.mrf.mxu0
  %1871 = vmatprep.mubr.f32.mxu0 0.0
  %1872 = vmatmul.mubr.f32.gmra.mxu0 %v1403
  %v1873 = vpop.f32.mrf.mxu0
  %v1874 = vadd.f32 %v1354, %v1873
  %v1875 = vpop.f32.mrf.mxu0
  %1876 = vmatprep.mubr.f32.mxu0 0.0
  %1877 = vmatmul.mubr.f32.gmra.mxu0 %v1406
  %v1878 = vpop.f32.mrf.mxu0
  %v1879 = vadd.f32 %v1354, %v1878
  %v1880 = vpop.f32.mrf.mxu0
  %1881 = vmatprep.mubr.f32.mxu0 0.0
  %1882 = vmatmul.mubr.f32.gmra.mxu0 %v1409
  %v1883 = vpop.f32.mrf.mxu0
  %v1884 = vadd.f32 %v1354, %v1883
  %v1885 = vpop.f32.mrf.mxu0
  %1886 = vmatprep.mubr.f32.mxu0 0.0
  %1887 = vmatmul.mubr.f32.gmra.mxu0 %v1412
  %v1888 = vpop.f32.mrf.mxu0
  %v1889 = vadd.f32 %v1354, %v1888
  %v1890 = vpop.f32.mrf.mxu0
  %1891 = vmatprep.mubr.f32.mxu0 0.0
  %1892 = vmatmul.mubr.f32.gmra.mxu0 %v1415
  %v1893 = vpop.f32.mrf.mxu0
  %v1894 = vadd.f32 %v1354, %v1893
  %v1895 = vpop.f32.mrf.mxu0
  %1896 = vmatprep.mubr.f32.mxu0 0.0
  %1897 = vmatmul.mubr.f32.gmra.mxu0 %v1418
  %v1898 = vpop.f32.mrf.mxu0
  %v1899 = vadd.f32 %v1354, %v1898
  %v1900 = vpop.f32.mrf.mxu0
  %1901 = vmatprep.mubr.f32.mxu0 0.0
  %1902 = vmatmul.mubr.f32.gmra.mxu0 %v1421
  %v1903 = vpop.f32.mrf.mxu0
  %v1904 = vadd.f32 %v1354, %v1903
  %v1905 = vpop.f32.mrf.mxu0
  %1906 = vmatprep.mubr.f32.mxu0 0.0
  %1907 = vmatmul.mubr.f32.gmra.mxu0 %v1424
  %v1908 = vpop.f32.mrf.mxu0
  %v1909 = vadd.f32 %v1354, %v1908
  %v1910 = vpop.f32.mrf.mxu0
  %1911 = vmatprep.mubr.f32.mxu0 0.0
  %1912 = vmatmul.mubr.f32.gmra.mxu0 %v1427
  %v1913 = vpop.f32.mrf.mxu0
  %v1914 = vadd.f32 %v1354, %v1913
  %v1915 = vpop.f32.mrf.mxu0
  %1916 = vmatprep.mubr.f32.mxu0 0.0
  %1917 = vmatmul.mubr.f32.gmra.mxu0 %v1430
  %v1918 = vpop.f32.mrf.mxu0
  %v1919 = vadd.f32 %v1354, %v1918
  %v1920 = vpop.f32.mrf.mxu0
  %1921 = vmatprep.mubr.f32.mxu0 0.0
  %1922 = vmatmul.mubr.f32.gmra.mxu0 %v1433
  %v1923 = vpop.f32.mrf.mxu0
  %v1924 = vadd.f32 %v1354, %v1923
  %v1925 = vpop.f32.mrf.mxu0
  %1926 = vmatprep.mubr.f32.mxu0 0.0
  %1927 = vmatmul.mubr.f32.gmra.mxu0 %v1436
  %v1928 = vpop.f32.mrf.mxu0
  %v1929 = vadd.f32 %v1354, %v1928
  %v1930 = vpop.f32.mrf.mxu0
  %1931 = vmatprep.mubr.f32.mxu0 0.0
  %1932 = vmatmul.mubr.f32.gmra.mxu0 %v1439
  %v1933 = vpop.f32.mrf.mxu0
  %v1934 = vadd.f32 %v1354, %v1933
  %v1935 = vpop.f32.mrf.mxu0
  %1936 = vmatprep.mubr.f32.mxu0 0.0
  %1937 = vmatmul.mubr.f32.gmra.mxu0 %v1442
  %v1938 = vpop.f32.mrf.mxu0
  %v1939 = vadd.f32 %v1354, %v1938
  %v1940 = vpop.f32.mrf.mxu0
  %1941 = vmatprep.mubr.f32.mxu0 0.0
  %1942 = vmatmul.mubr.f32.gmra.mxu0 %v1445
  %v1943 = vpop.f32.mrf.mxu0
  %v1944 = vadd.f32 %v1354, %v1943
  %v1945 = vpop.f32.mrf.mxu0
  %1946 = vmatprep.mubr.f32.mxu0 0.0
  %1947 = vmatmul.mubr.f32.gmra.mxu0 %v1448
  %v1948 = vpop.f32.mrf.mxu0
  %v1949 = vadd.f32 %v1354, %v1948
  %v1950 = vpop.f32.mrf.mxu0
  %1951 = vmatprep.mubr.f32.mxu0 0.0
  %1952 = vmatmul.mubr.f32.gmra.mxu0 %v1451
  %v1953 = vpop.f32.mrf.mxu0
  %v1954 = vadd.f32 %v1354, %v1953
  %v1955 = vpop.f32.mrf.mxu0
  %1956 = vmatprep.mubr.f32.mxu0 0.0
  %1957 = vmatmul.mubr.f32.gmra.mxu0 %v1454
  %v1958 = vpop.f32.mrf.mxu0
  %v1959 = vadd.f32 %v1354, %v1958
  %v1960 = vpop.f32.mrf.mxu0
  %1961 = vmatprep.mubr.f32.mxu0 0.0
  %1962 = vmatmul.mubr.f32.gmra.mxu0 %v1457
  %v1963 = vpop.f32.mrf.mxu0
  %v1964 = vadd.f32 %v1354, %v1963
  %v1965 = vpop.f32.mrf.mxu0
  %1966 = vmatprep.mubr.f32.mxu0 0.0
  %1967 = vmatmul.mubr.f32.gmra.mxu0 %v1460
  %v1968 = vpop.f32.mrf.mxu0
  %v1969 = vadd.f32 %v1354, %v1968
  %v1970 = vpop.f32.mrf.mxu0
  %1971 = vmatprep.mubr.f32.mxu0 0.0
  %1972 = vmatmul.mubr.f32.gmra.mxu0 %v1463
  %v1973 = vpop.f32.mrf.mxu0
  %v1974 = vadd.f32 %v1354, %v1973
  %v1975 = vpop.f32.mrf.mxu0
  %1976 = vmatprep.mubr.f32.mxu0 0.0
  %1977 = vmatmul.mubr.f32.gmra.mxu0 %v1466
  %v1978 = vpop.f32.mrf.mxu0
  %v1979 = vadd.f32 %v1354, %v1978
  %v1980 = vpop.f32.mrf.mxu0
  %1981 = vmatprep.mubr.f32.mxu0 0.0
  %1982 = vmatmul.mubr.f32.gmra.mxu0 %v1469
  %v1983 = vpop.f32.mrf.mxu0
  %v1984 = vadd.f32 %v1354, %v1983
  %v1985 = vpop.f32.mrf.mxu0
  %1986 = vmatprep.mubr.f32.mxu0 0.0
  %1987 = vmatmul.mubr.f32.gmra.mxu0 %v1472
  %v1988 = vpop.f32.mrf.mxu0
  %v1989 = vadd.f32 %v1354, %v1988
  %v1990 = vpop.f32.mrf.mxu0
  %1991 = vmatprep.mubr.f32.mxu0 0.0
  %1992 = vmatmul.mubr.f32.gmra.mxu0 %v1475
  %v1993 = vpop.f32.mrf.mxu0
  %v1994 = vadd.f32 %v1354, %v1993
  %v1995 = vpop.f32.mrf.mxu0
  %1996 = vmatprep.mubr.f32.mxu0 0.0
  %1997 = vmatmul.mubr.f32.gmra.mxu0 %v1478
  %v1998 = vpop.f32.mrf.mxu0
  %v1999 = vadd.f32 %v1354, %v1998
  %v2000 = vpop.f32.mrf.mxu0
  %2001 = vmatprep.mubr.f32.mxu0 0.0
  %2002 = vmatmul.mubr.f32.gmra.mxu0 %v1481
  %v2003 = vpop.f32.mrf.mxu0
  %v2004 = vadd.f32 %v1354, %v2003
  %v2005 = vpop.f32.mrf.mxu0
  %2006 = vmatprep.mubr.f32.mxu0 0.0
  %2007 = vmatmul.mubr.f32.gmra.mxu0 %v1484
  %v2008 = vpop.f32.mrf.mxu0
  %v2009 = vadd.f32 %v1354, %v2008
  %v2010 = vpop.f32.mrf.mxu0
  %2011 = vmatprep.mubr.f32.mxu0 0.0
  %2012 = vmatmul.mubr.f32.gmra.mxu0 %v1487
  %v2013 = vpop.f32.mrf.mxu0
  %v2014 = vadd.f32 %v1354, %v2013
  %v2015 = vpop.f32.mrf.mxu0
  %2016 = vmatprep.mubr.f32.mxu0 0.0
  %2017 = vmatmul.mubr.f32.gmra.mxu0 %v1490
  %v2018 = vpop.f32.mrf.mxu0
  %v2019 = vadd.f32 %v1354, %v2018
  %v2020 = vpop.f32.mrf.mxu0
  %2021 = vmatprep.mubr.f32.mxu0 0.0
  %2022 = vmatmul.mubr.f32.gmra.mxu0 %v1493
  %v2023 = vpop.f32.mrf.mxu0
  %v2024 = vadd.f32 %v1354, %v2023
  %v2025 = vpop.f32.mrf.mxu0
  %2026 = vmatprep.mubr.f32.mxu0 0.0
  %2027 = vmatmul.mubr.f32.gmra.mxu0 %v1496
  %v2028 = vpop.f32.mrf.mxu0
  %v2029 = vadd.f32 %v1354, %v2028
  %v2030 = vpop.f32.mrf.mxu0
  %2031 = vmatprep.mubr.f32.mxu0 0.0
  %2032 = vmatmul.mubr.f32.gmra.mxu0 %v1499
  %v2033 = vpop.f32.mrf.mxu0
  %v2034 = vadd.f32 %v1354, %v2033
  %v2035 = vpop.f32.mrf.mxu0
  %2036 = vmatprep.mubr.f32.mxu0 0.0
  %2037 = vmatmul.mubr.f32.gmra.mxu0 %v1502
  %v2038 = vpop.f32.mrf.mxu0
  %v2039 = vadd.f32 %v1354, %v2038
  %v2040 = vpop.f32.mrf.mxu0
  %2041 = vmatprep.mubr.f32.mxu0 0.0
  %2042 = vmatmul.mubr.f32.gmra.mxu0 %v1505
  %v2043 = vpop.f32.mrf.mxu0
  %v2044 = vadd.f32 %v1354, %v2043
  %v2045 = vpop.f32.mrf.mxu0
  %2046 = vmatprep.mubr.f32.mxu0 0.0
  %2047 = vmatmul.mubr.f32.gmra.mxu0 %v1508
  %v2048 = vpop.f32.mrf.mxu0
  %v2049 = vadd.f32 %v1354, %v2048
  %v2050 = vpop.f32.mrf.mxu0
  %2051 = vmatprep.mubr.f32.mxu0 0.0
  %2052 = vmatmul.mubr.f32.gmra.mxu0 %v1511
  %v2053 = vpop.f32.mrf.mxu0
  %v2054 = vadd.f32 %v1354, %v2053
  %v2055 = vpop.f32.mrf.mxu0
  %2056 = vmatprep.mubr.f32.mxu0 0.0
  %2057 = vmatmul.mubr.f32.gmra.mxu0 %v1514
  %v2058 = vpop.f32.mrf.mxu0
  %v2059 = vadd.f32 %v1354, %v2058
  %v2060 = vpop.f32.mrf.mxu0
  %2061 = vmatprep.mubr.f32.mxu0 0.0
  %2062 = vmatmul.mubr.f32.gmra.mxu0 %v1517
  %v2063 = vpop.f32.mrf.mxu0
  %v2064 = vadd.f32 %v1354, %v2063
  %v2065 = vpop.f32.mrf.mxu0
  %2066 = vmatprep.mubr.f32.mxu0 0.0
  %2067 = vmatmul.mubr.f32.gmra.mxu0 %v1520
  %v2068 = vpop.f32.mrf.mxu0
  %v2069 = vadd.f32 %v1354, %v2068
  %v2070 = vpop.f32.mrf.mxu0
  %2071 = vmatprep.mubr.f32.mxu0 0.0
  %2072 = vmatmul.mubr.f32.gmra.mxu0 %v1523
  %v2073 = vpop.f32.mrf.mxu0
  %v2074 = vadd.f32 %v1354, %v2073
  %v2075 = vpop.f32.mrf.mxu0
  %2076 = vmatprep.mubr.f32.mxu0 0.0
  %2077 = vmatmul.mubr.f32.gmra.mxu0 %v1526
  %v2078 = vpop.f32.mrf.mxu0
  %v2079 = vadd.f32 %v1354, %v2078
  %v2080 = vpop.f32.mrf.mxu0
  %2081 = vmatprep.mubr.f32.mxu0 0.0
  %2082 = vmatmul.mubr.f32.gmra.mxu0 %v1529
  %v2083 = vpop.f32.mrf.mxu0
  %v2084 = vadd.f32 %v1354, %v2083
  %v2085 = vpop.f32.mrf.mxu0
  %2086 = vmatprep.mubr.f32.mxu0 0.0
  %2087 = vmatmul.mubr.f32.gmra.mxu0 %v1532
  %v2088 = vpop.f32.mrf.mxu0
  %v2089 = vadd.f32 %v1354, %v2088
  %v2090 = vpop.f32.mrf.mxu0
  %2091 = vmatprep.mubr.f32.mxu0 0.0
  %2092 = vmatmul.mubr.f32.gmra.mxu0 %v1535
  %v2093 = vpop.f32.mrf.mxu0
  %v2094 = vadd.f32 %v1354, %v2093
  %v2095 = vpop.f32.mrf.mxu0
  %2096 = vmatprep.mubr.f32.mxu0 0.0
  %2097 = vmatmul.mubr.f32.gmra.mxu0 %v1538
  %v2098 = vpop.f32.mrf.mxu0
  %v2099 = vadd.f32 %v1354, %v2098
  %v2100 = vpop.f32.mrf.mxu0
  %2101 = vmatprep.mubr.f32.mxu0 0.0
  %2102 = vmatmul.mubr.f32.gmra.mxu0 %v1541
  %v2103 = vpop.f32.mrf.mxu0
  %v2104 = vadd.f32 %v1354, %v2103
  %v2105 = vpop.f32.mrf.mxu0
  %2106 = vmatprep.mubr.f32.mxu0 0.0
  %2107 = vmatmul.mubr.f32.gmra.mxu0 %v1544
  %v2108 = vpop.f32.mrf.mxu0
  %v2109 = vadd.f32 %v1354, %v2108
  %v2110 = vpop.f32.mrf.mxu0
  %2111 = vmatprep.mubr.f32.mxu0 0.0
  %2112 = vmatmul.mubr.f32.gmra.mxu0 %v1547
  %v2113 = vpop.f32.mrf.mxu0
  %v2114 = vadd.f32 %v1354, %v2113
  %v2115 = vpop.f32.mrf.mxu0
  %2116 = vmatprep.mubr.f32.mxu0 0.0
  %2117 = vmatmul.mubr.f32.gmra.mxu0 %v1550
  %v2118 = vpop.f32.mrf.mxu0
  %v2119 = vadd.f32 %v1354, %v2118
  %v2120 = vpop.f32.mrf.mxu0
  %2121 = vmatprep.mubr.f32.mxu0 0.0
  %2122 = vmatmul.mubr.f32.gmra.mxu0 %v1553
  %v2123 = vpop.f32.mrf.mxu0
  %v2124 = vadd.f32 %v1354, %v2123
  %v2125 = vpop.f32.mrf.mxu0
  %2126 = vmatprep.mubr.f32.mxu0 0.0
  %2127 = vmatmul.mubr.f32.gmra.mxu0 %v1556
  %v2128 = vpop.f32.mrf.mxu0
  %v2129 = vadd.f32 %v1354, %v2128
  %v2130 = vpop.f32.mrf.mxu0
  %2131 = vmatprep.mubr.f32.mxu0 0.0
  %2132 = vmatmul.mubr.f32.gmra.mxu0 %v1559
  %v2133 = vpop.f32.mrf.mxu0
  %v2134 = vadd.f32 %v1354, %v2133
  %v2135 = vpop.f32.mrf.mxu0
  %2136 = vmatprep.mubr.f32.mxu0 0.0
  %2137 = vmatmul.mubr.f32.gmra.mxu0 %v1562
  %v2138 = vpop.f32.mrf.mxu0
  %v2139 = vadd.f32 %v1354, %v2138
  %v2140 = vpop.f32.mrf.mxu0
  %2141 = vmatprep.mubr.f32.mxu0 0.0
  %2142 = vmatmul.mubr.f32.gmra.mxu0 %v1565
  %v2143 = vpop.f32.mrf.mxu0
  %v2144 = vadd.f32 %v1354, %v2143
  %v2145 = vpop.f32.mrf.mxu0
  %2146 = vmatprep.mubr.f32.mxu0 0.0
  %2147 = vmatmul.mubr.f32.gmra.mxu0 %v1568
  %v2148 = vpop.f32.mrf.mxu0
  %v2149 = vadd.f32 %v1354, %v2148
  %v2150 = vpop.f32.mrf.mxu0
  %2151 = vmatprep.mubr.f32.mxu0 0.0
  %2152 = vmatmul.mubr.f32.gmra.mxu0 %v1571
  %v2153 = vpop.f32.mrf.mxu0
  %v2154 = vadd.f32 %v1354, %v2153
  %v2155 = vpop.f32.mrf.mxu0
  %2156 = vmatprep.mubr.f32.mxu0 0.0
  %2157 = vmatmul.mubr.f32.gmra.mxu0 %v1574
  %v2158 = vpop.f32.mrf.mxu0
  %v2159 = vadd.f32 %v1354, %v2158
  %v2160 = vpop.f32.mrf.mxu0
  %2161 = vmatprep.mubr.f32.mxu0 0.0
  %2162 = vmatmul.mubr.f32.gmra.mxu0 %v1577
  %v2163 = vpop.f32.mrf.mxu0
  %v2164 = vadd.f32 %v1354, %v2163
  %v2165 = vpop.f32.mrf.mxu0
  %2166 = vmatprep.mubr.f32.mxu0 0.0
  %2167 = vmatmul.mubr.f32.gmra.mxu0 %v1580
  %v2168 = vpop.f32.mrf.mxu0
  %v2169 = vadd.f32 %v1354, %v2168
  %v2170 = vpop.f32.mrf.mxu0
  %2171 = vmatprep.mubr.f32.mxu0 0.0
  %2172 = vmatmul.mubr.f32.gmra.mxu0 %v1583
  %v2173 = vpop.f32.mrf.mxu0
  %v2174 = vadd.f32 %v1354, %v2173
  %v2175 = vpop.f32.mrf.mxu0
  %2176 = vmatprep.mubr.f32.mxu0 0.0
  %2177 = vmatmul.mubr.f32.gmra.mxu0 %v1586
  %v2178 = vpop.f32.mrf.mxu0
  %v2179 = vadd.f32 %v1354, %v2178
  %v2180 = vpop.f32.mrf.mxu0
  %2181 = vmatprep.mubr.f32.mxu0 0.0
  %2182 = vmatmul.mubr.f32.gmra.mxu0 %v1589
  %v2183 = vpop.f32.mrf.mxu0
  %v2184 = vadd.f32 %v1354, %v2183
  %v2185 = vpop.f32.mrf.mxu0
  %2186 = vmatprep.mubr.f32.mxu0 0.0
  %2187 = vmatmul.mubr.f32.gmra.mxu0 %v1592
  %v2188 = vpop.f32.mrf.mxu0
  %v2189 = vadd.f32 %v1354, %v2188
  %v2190 = vpop.f32.mrf.mxu0
  %2191 = vmatprep.mubr.f32.mxu0 0.0
  %2192 = vmatmul.mubr.f32.gmra.mxu0 %v1595
  %v2193 = vpop.f32.mrf.mxu0
  %v2194 = vadd.f32 %v1354, %v2193
  %v2195 = vpop.f32.mrf.mxu0
  %2196 = vmatprep.mubr.f32.mxu0 0.0
  %2197 = vmatmul.mubr.f32.gmra.mxu0 %v1598
  %v2198 = vpop.f32.mrf.mxu0
  %v2199 = vadd.f32 %v1354, %v2198
  %v2200 = vpop.f32.mrf.mxu0
  %2201 = vmatprep.mubr.f32.mxu0 0.0
  %2202 = vmatmul.mubr.f32.gmra.mxu0 %v1601
  %v2203 = vpop.f32.mrf.mxu0
  %v2204 = vadd.f32 %v1354, %v2203
  %v2205 = vpop.f32.mrf.mxu0
  %2206 = vmatprep.mubr.f32.mxu0 0.0
  %2207 = vmatmul.mubr.f32.gmra.mxu0 %v1604
  %v2208 = vpop.f32.mrf.mxu0
  %v2209 = vadd.f32 %v1354, %v2208
  %v2210 = vpop.f32.mrf.mxu0
  %2211 = vmatprep.mubr.f32.mxu0 0.0
  %2212 = vmatmul.mubr.f32.gmra.mxu0 %v1607
  %v2213 = vpop.f32.mrf.mxu0
  %v2214 = vadd.f32 %v1354, %v2213
  %v2215 = vpop.f32.mrf.mxu0
  %2216 = vmatprep.mubr.f32.mxu0 0.0
  %2217 = vmatmul.mubr.f32.gmra.mxu0 %v1610
  %v2218 = vpop.f32.mrf.mxu0
  %v2219 = vadd.f32 %v1354, %v2218
  %v2220 = vpop.f32.mrf.mxu0
  %2221 = vmatprep.mubr.f32.mxu0 0.0
  %2222 = vmatmul.mubr.f32.gmra.mxu0 %v1613
  %v2223 = vpop.f32.mrf.mxu0
  %v2224 = vadd.f32 %v1354, %v2223
  %v2225 = vpop.f32.mrf.mxu0
  %2226 = vmatprep.mubr.f32.mxu0 0.0
  %2227 = vmatmul.mubr.f32.gmra.mxu0 %v1616
  %v2228 = vpop.f32.mrf.mxu0
  %v2229 = vadd.f32 %v1354, %v2228
  %v2230 = vpop.f32.mrf.mxu0
  %2231 = vmatprep.mubr.f32.mxu0 0.0
  %2232 = vmatmul.mubr.f32.gmra.mxu0 %v1619
  %v2233 = vpop.f32.mrf.mxu0
  %v2234 = vadd.f32 %v1354, %v2233
  %v2235 = vpop.f32.mrf.mxu0
  %2236 = vmatprep.mubr.f32.mxu0 0.0
  %2237 = vmatmul.mubr.f32.gmra.mxu0 %v1622
  %v2238 = vpop.f32.mrf.mxu0
  %v2239 = vadd.f32 %v1354, %v2238
  %v2240 = vpop.f32.mrf.mxu0
  %2241 = vmatprep.mubr.f32.mxu0 0.0
  %2242 = vmatmul.mubr.f32.gmra.mxu0 %v1625
  %v2243 = vpop.f32.mrf.mxu0
  %v2244 = vadd.f32 %v1354, %v2243
  %v2245 = vpop.f32.mrf.mxu0
  %2246 = vmatprep.mubr.f32.mxu0 0.0
  %2247 = vmatmul.mubr.f32.gmra.mxu0 %v1628
  %v2248 = vpop.f32.mrf.mxu0
  %v2249 = vadd.f32 %v1354, %v2248
  %v2250 = vpop.f32.mrf.mxu0
  %2251 = vmatprep.mubr.f32.mxu0 0.0
  %2252 = vmatmul.mubr.f32.gmra.mxu0 %v1631
  %v2253 = vpop.f32.mrf.mxu0
  %v2254 = vadd.f32 %v1354, %v2253
  %v2255 = vpop.f32.mrf.mxu0
  %2256 = vmatprep.mubr.f32.mxu0 0.0
  %2257 = vmatmul.mubr.f32.gmra.mxu0 %v1634
  %v2258 = vpop.f32.mrf.mxu0
  %v2259 = vadd.f32 %v1354, %v2258
  %v2260 = vpop.f32.mrf.mxu0
  %2261 = vmatprep.mubr.f32.mxu0 0.0
  %2262 = vmatmul.mubr.f32.gmra.mxu0 %v1637
  %v2263 = vpop.f32.mrf.mxu0
  %v2264 = vadd.f32 %v1354, %v2263
  %v2265 = vpop.f32.mrf.mxu0
  %2266 = vmatprep.mubr.f32.mxu0 0.0
  %2267 = vmatmul.mubr.f32.gmra.mxu0 %v1640
  %v2268 = vpop.f32.mrf.mxu0
  %v2269 = vadd.f32 %v1354, %v2268
  %v2270 = vpop.f32.mrf.mxu0
  %2271 = vmatprep.mubr.f32.mxu0 0.0
  %2272 = vmatmul.mubr.f32.gmra.mxu0 %v1643
  %v2273 = vpop.f32.mrf.mxu0
  %v2274 = vadd.f32 %v1354, %v2273
  %v2275 = vpop.f32.mrf.mxu0
  %2276 = vmatprep.mubr.f32.mxu0 0.0
  %2277 = vmatmul.mubr.f32.gmra.mxu0 %v1646
  %v2278 = vpop.f32.mrf.mxu0
  %v2279 = vadd.f32 %v1354, %v2278
  %v2280 = vpop.f32.mrf.mxu0
  %2281 = vmatprep.mubr.f32.mxu0 0.0
  %2282 = vmatmul.mubr.f32.gmra.mxu0 %v1649
  %v2283 = vpop.f32.mrf.mxu0
  %v2284 = vadd.f32 %v1354, %v2283
  %v2285 = vpop.f32.mrf.mxu0
  %2286 = vmatprep.mubr.f32.mxu0 0.0
  %2287 = vmatmul.mubr.f32.gmra.mxu0 %v1652
  %v2288 = vpop.f32.mrf.mxu0
  %v2289 = vadd.f32 %v1354, %v2288
  %v2290 = vpop.f32.mrf.mxu0
  %2291 = vmatprep.mubr.f32.mxu0 0.0
  %2292 = vmatmul.mubr.f32.gmra.mxu0 %v1655
  %v2293 = vpop.f32.mrf.mxu0
  %v2294 = vadd.f32 %v1354, %v2293
  %v2295 = vpop.f32.mrf.mxu0
  %2296 = vmatprep.mubr.f32.mxu0 0.0
  %2297 = vmatmul.mubr.f32.gmra.mxu0 %v1658
  %v2298 = vpop.f32.mrf.mxu0
  %v2299 = vadd.f32 %v1354, %v2298
  %v2300 = vpop.f32.mrf.mxu0
  %2301 = vmatprep.mubr.f32.mxu0 0.0
  %2302 = vmatmul.mubr.f32.gmra.mxu0 %v1661
  %v2303 = vpop.f32.mrf.mxu0
  %v2304 = vadd.f32 %v1354, %v2303
  %v2305 = vpop.f32.mrf.mxu0
  %2306 = vmatprep.mubr.f32.mxu0 0.0
  %2307 = vmatmul.mubr.f32.gmra.mxu0 %v1664
  %v2308 = vpop.f32.mrf.mxu0
  %v2309 = vadd.f32 %v1354, %v2308
  %v2310 = vpop.f32.mrf.mxu0
  %2311 = vmatprep.mubr.f32.mxu0 0.0
  %2312 = vmatmul.mubr.f32.gmra.mxu0 %v1667
  %v2313 = vpop.f32.mrf.mxu0
  %v2314 = vadd.f32 %v1354, %v2313
  %v2315 = vpop.f32.mrf.mxu0
  %2316 = vmatprep.mubr.f32.mxu0 0.0
  %2317 = vmatmul.mubr.f32.gmra.mxu0 %v1670
  %v2318 = vpop.f32.mrf.mxu0
  %v2319 = vadd.f32 %v1354, %v2318
  %v2320 = vpop.f32.mrf.mxu0
  %2321 = vmatprep.mubr.f32.mxu0 0.0
  %2322 = vmatmul.mubr.f32.gmra.mxu0 %v1673
  %v2323 = vpop.f32.mrf.mxu0
  %v2324 = vadd.f32 %v1354, %v2323
  %v2325 = vpop.f32.mrf.mxu0
  %2326 = vmatprep.mubr.f32.mxu0 0.0
  %2327 = vmatmul.mubr.f32.gmra.mxu0 %v1676
  %v2328 = vpop.f32.mrf.mxu0
  %v2329 = vadd.f32 %v1354, %v2328
  %v2330 = vpop.f32.mrf.mxu0
  %2331 = vmatprep.mubr.f32.mxu0 0.0
  %2332 = vmatmul.mubr.f32.gmra.mxu0 %v1679
  %v2333 = vpop.f32.mrf.mxu0
  %v2334 = vadd.f32 %v1354, %v2333
  %v2335 = vpop.f32.mrf.mxu0
  %2336 = vmatprep.mubr.f32.mxu0 0.0
  %2337 = vmatmul.mubr.f32.gmra.mxu0 %v1682
  %v2338 = vpop.f32.mrf.mxu0
  %v2339 = vadd.f32 %v1354, %v2338
  %v2340 = vpop.f32.mrf.mxu0
  %2341 = vmatprep.mubr.f32.mxu0 0.0
  %2342 = vmatmul.mubr.f32.gmra.mxu0 %v1685
  %v2343 = vpop.f32.mrf.mxu0
  %v2344 = vadd.f32 %v1354, %v2343
  %v2345 = vpop.f32.mrf.mxu0
  %2346 = vmatprep.mubr.f32.mxu0 0.0
  %2347 = vmatmul.mubr.f32.gmra.mxu0 %v1688
  %v2348 = vpop.f32.mrf.mxu0
  %v2349 = vadd.f32 %v1354, %v2348
  %v2350 = vpop.f32.mrf.mxu0
  %2351 = vmatprep.mubr.f32.mxu0 0.0
  %2352 = vmatmul.mubr.f32.gmra.mxu0 %v1691
  %v2353 = vpop.f32.mrf.mxu0
  %v2354 = vadd.f32 %v1354, %v2353
  %v2355 = vpop.f32.mrf.mxu0
  %2356 = vmatprep.mubr.f32.mxu0 0.0
  %2357 = vmatmul.mubr.f32.gmra.mxu0 %v1694
  %v2358 = vpop.f32.mrf.mxu0
  %v2359 = vadd.f32 %v1354, %v2358
  %v2360 = vpop.f32.mrf.mxu0
  %2361 = vmatprep.mubr.f32.mxu0 0.0
  %2362 = vmatmul.mubr.f32.gmra.mxu0 %v1697
  %v2363 = vpop.f32.mrf.mxu0
  %v2364 = vadd.f32 %v1354, %v2363
  %v2365 = vpop.f32.mrf.mxu0
  %2366 = vmatprep.mubr.f32.mxu0 0.0
  %2367 = vmatmul.mubr.f32.gmra.mxu0 %v1700
  %v2368 = vpop.f32.mrf.mxu0
  %v2369 = vadd.f32 %v1354, %v2368
  %v2370 = vpop.f32.mrf.mxu0
  %2371 = vmatprep.mubr.f32.mxu0 0.0
  %2372 = vmatmul.mubr.f32.gmra.mxu0 %v1703
  %v2373 = vpop.f32.mrf.mxu0
  %v2374 = vadd.f32 %v1354, %v2373
  %v2375 = vpop.f32.mrf.mxu0
  %2376 = vmatprep.mubr.f32.mxu0 0.0
  %2377 = vmatmul.mubr.f32.gmra.mxu0 %v1706
  %v2378 = vpop.f32.mrf.mxu0
  %v2379 = vadd.f32 %v1354, %v2378
  %v2380 = vpop.f32.mrf.mxu0
  %2381 = vmatprep.mubr.f32.mxu0 0.0
  %2382 = vmatmul.mubr.f32.gmra.mxu0 %v1709
  %v2383 = vpop.f32.mrf.mxu0
  %v2384 = vadd.f32 %v1354, %v2383
  %v2385 = vpop.f32.mrf.mxu0
  %2386 = vmatprep.mubr.f32.mxu0 0.0
  %2387 = vmatmul.mubr.f32.gmra.mxu0 %v1712
  %v2388 = vpop.f32.mrf.mxu0
  %v2389 = vadd.f32 %v1354, %v2388
  %v2390 = vpop.f32.mrf.mxu0
  %2391 = vmatprep.mubr.f32.mxu0 0.0
  %2392 = vmatmul.mubr.f32.gmra.mxu0 %v1715
  %v2393 = vpop.f32.mrf.mxu0
  %v2394 = vadd.f32 %v1354, %v2393
  %v2395 = vpop.f32.mrf.mxu0
  %2396 = vmatprep.mubr.f32.mxu0 0.0
  %2397 = vmatmul.mubr.f32.gmra.mxu0 %v1718
  %v2398 = vpop.f32.mrf.mxu0
  %v2399 = vadd.f32 %v1354, %v2398
  %v2400 = vpop.f32.mrf.mxu0
  %2401 = vmatprep.mubr.f32.mxu0 0.0
  %2402 = vmatmul.mubr.f32.gmra.mxu0 %v1721
  %v2403 = vpop.f32.mrf.mxu0
  %v2404 = vadd.f32 %v1354, %v2403
  %v2405 = vpop.f32.mrf.mxu0
  %2406 = vmatprep.mubr.f32.mxu0 0.0
  %2407 = vmatmul.mubr.f32.gmra.mxu0 %v1724
  %v2408 = vpop.f32.mrf.mxu0
  %v2409 = vadd.f32 %v1354, %v2408
  %v2410 = vpop.f32.mrf.mxu0
  %2411 = vmatprep.mubr.f32.mxu0 0.0
  %2412 = vmatmul.mubr.f32.gmra.mxu0 %v1727
  %v2413 = vpop.f32.mrf.mxu0
  %v2414 = vadd.f32 %v1354, %v2413
  %v2415 = vpop.f32.mrf.mxu0
  %2416 = vmatprep.mubr.f32.mxu0 0.0
  %2417 = vmatmul.mubr.f32.gmra.mxu0 %v1730
  %v2418 = vpop.f32.mrf.mxu0
  %v2419 = vadd.f32 %v1354, %v2418
  %v2420 = vpop.f32.mrf.mxu0
  %2421 = vdwg.mxu0
  %vm2422 = vcmask 64512
  %2423 = vst.msk [vmem:[%s5] sm:$0xff] %vm2422, %v1799
  %2424 = vst.msk [vmem:[%s5 + $0x8] sm:$0xff] %vm2422, %v1804
  %2425 = vst.msk [vmem:[%s5 + $0x10] sm:$0xff] %vm2422, %v1809
  %2426 = vst.msk [vmem:[%s5 + $0x18] sm:$0xff] %vm2422, %v1814
  %2427 = vst.msk [vmem:[%s5 + $0x20] sm:$0xff] %vm2422, %v1819
  %2428 = vst.msk [vmem:[%s5 + $0x28] sm:$0xff] %vm2422, %v1824
  %2429 = vst.msk [vmem:[%s5 + $0x30] sm:$0xff] %vm2422, %v1829
  %2430 = vst.msk [vmem:[%s5 + $0x38] sm:$0xff] %vm2422, %v1834
  %2431 = vst.msk [vmem:[%s5 + $0x40] sm:$0xff] %vm2422, %v1839
  %2432 = vst.msk [vmem:[%s5 + $0x48] sm:$0xff] %vm2422, %v1844
  %2433 = vst.msk [vmem:[%s5 + $0x50] sm:$0xff] %vm2422, %v1849
  %2434 = vst.msk [vmem:[%s5 + $0x58] sm:$0xff] %vm2422, %v1854
  %2435 = vst.msk [vmem:[%s5 + $0x60] sm:$0xff] %vm2422, %v1859
  %2436 = vst.msk [vmem:[%s5 + $0x68] sm:$0xff] %vm2422, %v1864
  %2437 = vst.msk [vmem:[%s5 + $0x70] sm:$0xff] %vm2422, %v1869
  %2438 = vst.msk [vmem:[%s5 + $0x78] sm:$0xff] %vm2422, %v1874
  %2439 = vst.msk [vmem:[%s5 + $0x80] sm:$0xff] %vm2422, %v1879
  %2440 = vst.msk [vmem:[%s5 + $0x88] sm:$0xff] %vm2422, %v1884
  %2441 = vst.msk [vmem:[%s5 + $0x90] sm:$0xff] %vm2422, %v1889
  %2442 = vst.msk [vmem:[%s5 + $0x98] sm:$0xff] %vm2422, %v1894
  %2443 = vst.msk [vmem:[%s5 + $0xa0] sm:$0xff] %vm2422, %v1899
  %2444 = vst.msk [vmem:[%s5 + $0xa8] sm:$0xff] %vm2422, %v1904
  %2445 = vst.msk [vmem:[%s5 + $0xb0] sm:$0xff] %vm2422, %v1909
  %2446 = vst.msk [vmem:[%s5 + $0xb8] sm:$0xff] %vm2422, %v1914
  %2447 = vst.msk [vmem:[%s5 + $0xc0] sm:$0xff] %vm2422, %v1919
  %2448 = vst.msk [vmem:[%s5 + $0xc8] sm:$0xff] %vm2422, %v1924
  %2449 = vst.msk [vmem:[%s5 + $0xd0] sm:$0xff] %vm2422, %v1929
  %2450 = vst.msk [vmem:[%s5 + $0xd8] sm:$0xff] %vm2422, %v1934
  %2451 = vst.msk [vmem:[%s5 + $0xe0] sm:$0xff] %vm2422, %v1939
  %2452 = vst.msk [vmem:[%s5 + $0xe8] sm:$0xff] %vm2422, %v1944
  %2453 = vst.msk [vmem:[%s5 + $0xf0] sm:$0xff] %vm2422, %v1949
  %2454 = vst.msk [vmem:[%s5 + $0xf8] sm:$0xff] %vm2422, %v1954
  %2455 = vst.msk [vmem:[%s5 + $0x100] sm:$0xff] %vm2422, %v1959
  %2456 = vst.msk [vmem:[%s5 + $0x108] sm:$0xff] %vm2422, %v1964
  %2457 = vst.msk [vmem:[%s5 + $0x110] sm:$0xff] %vm2422, %v1969
  %2458 = vst.msk [vmem:[%s5 + $0x118] sm:$0xff] %vm2422, %v1974
  %2459 = vst.msk [vmem:[%s5 + $0x120] sm:$0xff] %vm2422, %v1979
  %2460 = vst.msk [vmem:[%s5 + $0x128] sm:$0xff] %vm2422, %v1984
  %2461 = vst.msk [vmem:[%s5 + $0x130] sm:$0xff] %vm2422, %v1989
  %2462 = vst.msk [vmem:[%s5 + $0x138] sm:$0xff] %vm2422, %v1994
  %2463 = vst.msk [vmem:[%s5 + $0x140] sm:$0xff] %vm2422, %v1999
  %2464 = vst.msk [vmem:[%s5 + $0x148] sm:$0xff] %vm2422, %v2004
  %2465 = vst.msk [vmem:[%s5 + $0x150] sm:$0xff] %vm2422, %v2009
  %2466 = vst.msk [vmem:[%s5 + $0x158] sm:$0xff] %vm2422, %v2014
  %2467 = vst.msk [vmem:[%s5 + $0x160] sm:$0xff] %vm2422, %v2019
  %2468 = vst.msk [vmem:[%s5 + $0x168] sm:$0xff] %vm2422, %v2024
  %2469 = vst.msk [vmem:[%s5 + $0x170] sm:$0xff] %vm2422, %v2029
  %2470 = vst.msk [vmem:[%s5 + $0x178] sm:$0xff] %vm2422, %v2034
  %2471 = vst.msk [vmem:[%s5 + $0x180] sm:$0xff] %vm2422, %v2039
  %2472 = vst.msk [vmem:[%s5 + $0x188] sm:$0xff] %vm2422, %v2044
  %2473 = vst.msk [vmem:[%s5 + $0x190] sm:$0xff] %vm2422, %v2049
  %2474 = vst.msk [vmem:[%s5 + $0x198] sm:$0xff] %vm2422, %v2054
  %2475 = vst.msk [vmem:[%s5 + $0x1a0] sm:$0xff] %vm2422, %v2059
  %2476 = vst.msk [vmem:[%s5 + $0x1a8] sm:$0xff] %vm2422, %v2064
  %2477 = vst.msk [vmem:[%s5 + $0x1b0] sm:$0xff] %vm2422, %v2069
  %2478 = vst.msk [vmem:[%s5 + $0x1b8] sm:$0xff] %vm2422, %v2074
  %2479 = vst.msk [vmem:[%s5 + $0x1c0] sm:$0xff] %vm2422, %v2079
  %2480 = vst.msk [vmem:[%s5 + $0x1c8] sm:$0xff] %vm2422, %v2084
  %2481 = vst.msk [vmem:[%s5 + $0x1d0] sm:$0xff] %vm2422, %v2089
  %2482 = vst.msk [vmem:[%s5 + $0x1d8] sm:$0xff] %vm2422, %v2094
  %2483 = vst.msk [vmem:[%s5 + $0x1e0] sm:$0xff] %vm2422, %v2099
  %2484 = vst.msk [vmem:[%s5 + $0x1e8] sm:$0xff] %vm2422, %v2104
  %2485 = vst.msk [vmem:[%s5 + $0x1f0] sm:$0xff] %vm2422, %v2109
  %2486 = vst.msk [vmem:[%s5 + $0x1f8] sm:$0xff] %vm2422, %v2114
  %2487 = vst.msk [vmem:[%s5 + $0x200] sm:$0xff] %vm2422, %v2119
  %2488 = vst.msk [vmem:[%s5 + $0x208] sm:$0xff] %vm2422, %v2124
  %2489 = vst.msk [vmem:[%s5 + $0x210] sm:$0xff] %vm2422, %v2129
  %2490 = vst.msk [vmem:[%s5 + $0x218] sm:$0xff] %vm2422, %v2134
  %2491 = vst.msk [vmem:[%s5 + $0x220] sm:$0xff] %vm2422, %v2139
  %2492 = vst.msk [vmem:[%s5 + $0x228] sm:$0xff] %vm2422, %v2144
  %2493 = vst.msk [vmem:[%s5 + $0x230] sm:$0xff] %vm2422, %v2149
  %2494 = vst.msk [vmem:[%s5 + $0x238] sm:$0xff] %vm2422, %v2154
  %2495 = vst.msk [vmem:[%s5 + $0x240] sm:$0xff] %vm2422, %v2159
  %2496 = vst.msk [vmem:[%s5 + $0x248] sm:$0xff] %vm2422, %v2164
  %2497 = vst.msk [vmem:[%s5 + $0x250] sm:$0xff] %vm2422, %v2169
  %2498 = vst.msk [vmem:[%s5 + $0x258] sm:$0xff] %vm2422, %v2174
  %2499 = vst.msk [vmem:[%s5 + $0x260] sm:$0xff] %vm2422, %v2179
  %2500 = vst.msk [vmem:[%s5 + $0x268] sm:$0xff] %vm2422, %v2184
  %2501 = vst.msk [vmem:[%s5 + $0x270] sm:$0xff] %vm2422, %v2189
  %2502 = vst.msk [vmem:[%s5 + $0x278] sm:$0xff] %vm2422, %v2194
  %2503 = vst.msk [vmem:[%s5 + $0x280] sm:$0xff] %vm2422, %v2199
  %2504 = vst.msk [vmem:[%s5 + $0x288] sm:$0xff] %vm2422, %v2204
  %2505 = vst.msk [vmem:[%s5 + $0x290] sm:$0xff] %vm2422, %v2209
  %2506 = vst.msk [vmem:[%s5 + $0x298] sm:$0xff] %vm2422, %v2214
  %2507 = vst.msk [vmem:[%s5 + $0x2a0] sm:$0xff] %vm2422, %v2219
  %2508 = vst.msk [vmem:[%s5 + $0x2a8] sm:$0xff] %vm2422, %v2224
  %2509 = vst.msk [vmem:[%s5 + $0x2b0] sm:$0xff] %vm2422, %v2229
  %2510 = vst.msk [vmem:[%s5 + $0x2b8] sm:$0xff] %vm2422, %v2234
  %2511 = vst.msk [vmem:[%s5 + $0x2c0] sm:$0xff] %vm2422, %v2239
  %2512 = vst.msk [vmem:[%s5 + $0x2c8] sm:$0xff] %vm2422, %v2244
  %2513 = vst.msk [vmem:[%s5 + $0x2d0] sm:$0xff] %vm2422, %v2249
  %2514 = vst.msk [vmem:[%s5 + $0x2d8] sm:$0xff] %vm2422, %v2254
  %2515 = vst.msk [vmem:[%s5 + $0x2e0] sm:$0xff] %vm2422, %v2259
  %2516 = vst.msk [vmem:[%s5 + $0x2e8] sm:$0xff] %vm2422, %v2264
  %2517 = vst.msk [vmem:[%s5 + $0x2f0] sm:$0xff] %vm2422, %v2269
  %2518 = vst.msk [vmem:[%s5 + $0x2f8] sm:$0xff] %vm2422, %v2274
  %2519 = vst.msk [vmem:[%s5 + $0x300] sm:$0xff] %vm2422, %v2279
  %2520 = vst.msk [vmem:[%s5 + $0x308] sm:$0xff] %vm2422, %v2284
  %2521 = vst.msk [vmem:[%s5 + $0x310] sm:$0xff] %vm2422, %v2289
  %2522 = vst.msk [vmem:[%s5 + $0x318] sm:$0xff] %vm2422, %v2294
  %2523 = vst.msk [vmem:[%s5 + $0x320] sm:$0xff] %vm2422, %v2299
  %2524 = vst.msk [vmem:[%s5 + $0x328] sm:$0xff] %vm2422, %v2304
  %2525 = vst.msk [vmem:[%s5 + $0x330] sm:$0xff] %vm2422, %v2309
  %2526 = vst.msk [vmem:[%s5 + $0x338] sm:$0xff] %vm2422, %v2314
  %2527 = vst.msk [vmem:[%s5 + $0x340] sm:$0xff] %vm2422, %v2319
  %2528 = vst.msk [vmem:[%s5 + $0x348] sm:$0xff] %vm2422, %v2324
  %2529 = vst.msk [vmem:[%s5 + $0x350] sm:$0xff] %vm2422, %v2329
  %2530 = vst.msk [vmem:[%s5 + $0x358] sm:$0xff] %vm2422, %v2334
  %2531 = vst.msk [vmem:[%s5 + $0x360] sm:$0xff] %vm2422, %v2339
  %2532 = vst.msk [vmem:[%s5 + $0x368] sm:$0xff] %vm2422, %v2344
  %2533 = vst.msk [vmem:[%s5 + $0x370] sm:$0xff] %vm2422, %v2349
  %2534 = vst.msk [vmem:[%s5 + $0x378] sm:$0xff] %vm2422, %v2354
  %2535 = vst.msk [vmem:[%s5 + $0x380] sm:$0xff] %vm2422, %v2359
  %2536 = vst.msk [vmem:[%s5 + $0x388] sm:$0xff] %vm2422, %v2364
  %2537 = vst.msk [vmem:[%s5 + $0x390] sm:$0xff] %vm2422, %v2369
  %2538 = vst.msk [vmem:[%s5 + $0x398] sm:$0xff] %vm2422, %v2374
  %2539 = vst.msk [vmem:[%s5 + $0x3a0] sm:$0xff] %vm2422, %v2379
  %2540 = vst.msk [vmem:[%s5 + $0x3a8] sm:$0xff] %vm2422, %v2384
  %2541 = vst.msk [vmem:[%s5 + $0x3b0] sm:$0xff] %vm2422, %v2389
  %2542 = vst.msk [vmem:[%s5 + $0x3b8] sm:$0xff] %vm2422, %v2394
  %2543 = vst.msk [vmem:[%s5 + $0x3c0] sm:$0xff] %vm2422, %v2399
  %2544 = vst.msk [vmem:[%s5 + $0x3c8] sm:$0xff] %vm2422, %v2404
  %2545 = vst.msk [vmem:[%s5 + $0x3d0] sm:$0xff] %vm2422, %v2409
  %2546 = vst.msk [vmem:[%s5 + $0x3d8] sm:$0xff] %vm2422, %v2414
  %2547 = vst.msk [vmem:[%s5 + $0x3e0] sm:$0xff] %vm2422, %v2419
  // Predicated region
  $region22: #{tpu_custom_call.1} parent=0 // pred_check
    _
  $region23: #{tpu_custom_call.1} parent=0 // pred_check_branch
    %2549 = sbr.rel (0) target = $region25
  $region24: #{tpu_custom_call.1} parent=0 // pred_region
    _
  $region25: #{tpu_custom_call.1} parent=0 // pred_fallthru
    _
  // Predicated region
  $region26: #{tpu_custom_call.1} parent=0 // pred_check
    _
  $region27: #{tpu_custom_call.1} parent=0 // pred_check_branch
    %2551 = sbr.rel (0) target = $region29
  $region28: #{tpu_custom_call.1} parent=0 // pred_region
    _
  $region29: #{tpu_custom_call.1} parent=0 // pred_fallthru
    _

</llo_original>
